<compile_context>
chip_gen: v6e
topology: v6e:2x2x1
jax: 0.10.0
libtpu: 0.0.40
codegen_flags: <defaults>
</compile_context>

<pallas_src>
import numpy as np
import jax
import jax.numpy as jnp
from jax.experimental import pallas as pl
from jax.experimental.pallas import tpu as pltpu

_VMEM = pltpu.MemorySpace.VMEM
_BN_EPS = 1e-5


# ------------------------------ layout helpers (glue) ------------------------------- #

def _grid_dims(N, h, w):
    hp, wp = h + 2, w + 2
    ng = N * hp * wp
    pad_f = wp + 1
    return hp, wp, ng, pad_f, ng + 2 * pad_f


def _valid_mask(N, h, w):
    """(1, ng) mask: 1.0 at real pixels, 0.0 at pad positions."""
    m = np.zeros((N, h + 2, w + 2), np.float32)
    m[:, 1:h + 1, 1:w + 1] = 1.0
    return jnp.asarray(m.reshape(1, -1))


def _to_wide_bf16(x_nchw):
    """(N, C, H, W) f32 -> (C, full) bf16 flat padded grid with zero flank lanes."""
    N, C, h, w = x_nchw.shape
    _, _, ng, pad_f, _ = _grid_dims(N, h, w)
    x_sp = jnp.transpose(x_nchw, (1, 0, 2, 3))
    xp = jnp.pad(x_sp, ((0, 0), (0, 0), (1, 1), (1, 1)))
    return jnp.pad(xp.reshape(C, ng), ((0, 0), (pad_f, pad_f))).astype(jnp.bfloat16)


def _stack_weights_bf16(wgt):
    """(cout, cin, 3, 3) f32 -> (cout, 9*cin) bf16, tap-major (matches operand stack)."""
    cout, cin = wgt.shape[0], wgt.shape[1]
    return jnp.transpose(wgt, (0, 2, 3, 1)).reshape(cout, 9 * cin).astype(jnp.bfloat16)


# ----------------------------- fused UNetBlock kernel ------------------------------- #

def _make_block_kernel(cin, c1, c2, N, h, w):
    hp, wp, ng, pad_f, full = _grid_dims(N, h, w)
    inv_cnt = 1.0 / float(N * h * w)
    offs = [(kh - 1) * wp + (kw - 1) for kh in range(3) for kw in range(3)]

    def bn_relu(acc, g_ref, b_ref, mask, mask_out):
        # training-mode BatchNorm over the N*h*w valid pixels (single-pass f32 moments),
        # affine + ReLU; optionally re-mask so pad lanes stay exactly zero for the next conv.
        am = acc * mask
        s1 = jnp.sum(am, axis=1, keepdims=True)
        s2 = jnp.sum(am * acc, axis=1, keepdims=True)
        mean = s1 * inv_cnt
        var = jnp.maximum(s2 * inv_cnt - mean * mean, 0.0)
        scale = g_ref[...] * jax.lax.rsqrt(var + _BN_EPS)
        shift = b_ref[...] - mean * scale
        y = jnp.maximum(acc * scale + shift, 0.0)
        return y * mask if mask_out else y

    def kernel(x_ref, mask_ref, w1_ref, g1_ref, b1_ref, w2_ref, g2_ref, b2_ref,
               o_ref, x9a_ref, h_ref, x9b_ref):
        mask = mask_ref[...]                                     # (1, ng) f32

        # ---- conv1: stack 9 lane-shifted bf16 tap views -> single K=9*cin MXU matmul.
        for t, o in enumerate(offs):
            x9a_ref[t * cin:(t + 1) * cin, :] = x_ref[:, pad_f + o:pad_f + o + ng]
        acc1 = jnp.dot(w1_ref[...], x9a_ref[...],
                       preferred_element_type=jnp.float32)       # (c1, ng) f32
        y1 = bn_relu(acc1, g1_ref, b1_ref, mask, mask_out=True)

        # ---- stage y1 once as bf16 in the zero-flanked scratch; zero ONLY the flanks
        # (interior pad lanes are already zero because y1 is masked).
        h_ref[:, :pad_f] = jnp.zeros((c1, pad_f), jnp.bfloat16)
        h_ref[:, pad_f + ng:] = jnp.zeros((c1, pad_f), jnp.bfloat16)
        h_ref[:, pad_f:pad_f + ng] = y1.astype(jnp.bfloat16)

        # ---- conv2: same tap-stacked single matmul, K = 9*c1.
        for t, o in enumerate(offs):
            x9b_ref[t * c1:(t + 1) * c1, :] = h_ref[:, pad_f + o:pad_f + o + ng]
        acc2 = jnp.dot(w2_ref[...], x9b_ref[...],
                       preferred_element_type=jnp.float32)       # (c2, ng) f32
        o_ref[...] = bn_relu(acc2, g2_ref, b2_ref, mask, mask_out=False)

    return kernel


def unet_block_forward(x_nchw, p):
    """Fused UNetBlock forward (training-mode BN), NCHW in / NCHW out."""
    N, cin, h, w = x_nchw.shape
    c1, c2 = int(p["w1"].shape[0]), int(p["w2"].shape[0])
    hp, wp, ng, pad_f, full = _grid_dims(N, h, w)

    kernel = _make_block_kernel(cin, c1, c2, N, h, w)
    out_flat = pl.pallas_call(
        kernel,
        out_shape=jax.ShapeDtypeStruct((c2, ng), jnp.float32),
        in_specs=[pl.BlockSpec(memory_space=_VMEM)] * 8,
        out_specs=pl.BlockSpec(memory_space=_VMEM),
        scratch_shapes=[
            pltpu.VMEM((9 * cin, ng), jnp.bfloat16),   # stacked conv1 operand
            pltpu.VMEM((c1, full), jnp.bfloat16),      # zero-flanked staged y1 (bf16)
            pltpu.VMEM((9 * c1, ng), jnp.bfloat16),    # stacked conv2 operand
        ],
    )(
        _to_wide_bf16(x_nchw),
        _valid_mask(N, h, w),
        _stack_weights_bf16(p["w1"]),
        p["g1"].reshape(c1, 1), p["be1"].reshape(c1, 1),
        _stack_weights_bf16(p["w2"]),
        p["g2"].reshape(c2, 1), p["be2"].reshape(c2, 1),
    )

    out_sp = out_flat.reshape(c2, N, hp, wp)[:, :, 1:h + 1, 1:w + 1]
    return jnp.transpose(out_sp, (1, 0, 2, 3))                    # -> NCHW


# ----------------------------- params & f32 reference ------------------------------- #

def init_params(key, cin, cout):
    ks = jax.random.split(key, 8)
    w1 = jax.random.normal(ks[0], (cout, cin, 3, 3), jnp.float32) / np.sqrt(9 * cin)
    b1 = 0.1 * jax.random.normal(ks[1], (cout,), jnp.float32)
    g1 = 1.0 + 0.1 * jax.random.normal(ks[2], (cout,), jnp.float32)
    be1 = 0.1 * jax.random.normal(ks[3], (cout,), jnp.float32)
    w2 = jax.random.normal(ks[4], (cout, cout, 3, 3), jnp.float32) / np.sqrt(9 * cout)
    b2 = 0.1 * jax.random.normal(ks[5], (cout,), jnp.float32)
    g2 = 1.0 + 0.1 * jax.random.normal(ks[6], (cout,), jnp.float32)
    be2 = 0.1 * jax.random.normal(ks[7], (cout,), jnp.float32)
    return dict(w1=w1, b1=b1, g1=g1, be1=be1, w2=w2, b2=b2, g2=g2, be2=be2)


def reference_forward(x, p):
    """Pure-JAX f32 reference matching the PyTorch module in training mode
    (conv bias included; it is exactly cancelled by the BN mean subtraction)."""
    def conv_bn_relu(x, wgt, b, g, beta):
        y = jax.lax.conv_general_dilated(
            x, wgt, window_strides=(1, 1), padding="SAME",
            dimension_numbers=("NCHW", "OIHW", "NCHW")) + b[None, :, None, None]
        mean = jnp.mean(y, axis=(0, 2, 3), keepdims=True)
        var = jnp.mean((y - mean) ** 2, axis=(0, 2, 3), keepdims=True)
        y = (y - mean) * jax.lax.rsqrt(var + _BN_EPS)
        return jnp.maximum(y * g[None, :, None, None] + beta[None, :, None, None], 0.0)

    y = conv_bn_relu(x, p["w1"], p["b1"], p["g1"], p["be1"])
    return conv_bn_relu(y, p["w2"], p["b2"], p["g2"], p["be2"])


# --------------------------------------- main ---------------------------------------- #

if __name__ == "__main__":
    N, CIN, COUT, H, W = 2, 4, 8, 16, 16
    key = jax.random.PRNGKey(0)
    k_params, k_x = jax.random.split(key)
    params = init_params(k_params, CIN, COUT)
    x = jax.random.normal(k_x, (N, CIN, H, W), jnp.float32)       # NCHW, like PyTorch

    fwd = jax.jit(unet_block_forward)
    out = fwd(x, params)
    jax.block_until_ready(out)

    assert out.shape == (N, COUT, H, W), out.shape
    assert bool(jnp.all(jnp.isfinite(out)))

    # bf16 MXU operands -> compare against the f32 reference with a loose tolerance.
    ref = reference_forward(x, params)
    max_err = float(jnp.max(jnp.abs(out - ref)))
    assert max_err < 1e-1, f"max abs err vs f32 reference too large: {max_err}"
    print("KERNEL_OK")
</pallas_src>

<mosaic_0001>
module attributes {stable_mosaic.version = 11 : i64} {
  func.func @kernel(%arg0: memref<4x686xbf16, #tpu.memory_space<vmem>>, %arg1: memref<1x648xf32, #tpu.memory_space<vmem>>, %arg2: memref<8x36xbf16, #tpu.memory_space<vmem>>, %arg3: memref<8x1xf32, #tpu.memory_space<vmem>>, %arg4: memref<8x1xf32, #tpu.memory_space<vmem>>, %arg5: memref<8x72xbf16, #tpu.memory_space<vmem>>, %arg6: memref<8x1xf32, #tpu.memory_space<vmem>>, %arg7: memref<8x1xf32, #tpu.memory_space<vmem>>, %arg8: memref<8x648xf32, #tpu.memory_space<vmem>>, %arg9: memref<36x648xbf16, #tpu.memory_space<vmem>>, %arg10: memref<8x686xbf16, #tpu.memory_space<vmem>>, %arg11: memref<72x648xbf16, #tpu.memory_space<vmem>>) attributes {dimension_semantics = [], scalar_prefetch = 0 : i64, scratch_operands = 3 : i64, tpu.core_type = #tpu.core_type<tc>} {
    %c0 = arith.constant 0 : index
    %c0_0 = arith.constant 0 : index
    %0 = vector.load %arg1[%c0, %c0_0] : memref<1x648xf32, #tpu.memory_space<vmem>>, vector<1x648xf32>
    %c0_1 = arith.constant 0 : index
    %c0_2 = arith.constant 0 : index
    %1 = vector.load %arg0[%c0_1, %c0_2] : memref<4x686xbf16, #tpu.memory_space<vmem>>, vector<4x648xbf16>
    %c0_3 = arith.constant 0 : index
    %c0_4 = arith.constant 0 : index
    %2 = vector.load %arg9[%c0_3, %c0_4] : memref<36x648xbf16, #tpu.memory_space<vmem>>, vector<4x648xbf16>
    tpu.vector_store %arg9[%c0_3, %c0_4], %1 {strides = array<i32>} : memref<36x648xbf16, #tpu.memory_space<vmem>>, vector<4x648xbf16>,
    %c0_5 = arith.constant 0 : index
    %c1 = arith.constant 1 : index
    %3 = vector.load %arg0[%c0_5, %c1] : memref<4x686xbf16, #tpu.memory_space<vmem>>, vector<4x648xbf16>
    %c4 = arith.constant 4 : index
    %c0_6 = arith.constant 0 : index
    %4 = vector.load %arg9[%c4, %c0_6] : memref<36x648xbf16, #tpu.memory_space<vmem>>, vector<4x648xbf16>
    tpu.vector_store %arg9[%c4, %c0_6], %3 {strides = array<i32>} : memref<36x648xbf16, #tpu.memory_space<vmem>>, vector<4x648xbf16>,
    %c0_7 = arith.constant 0 : index
    %c2 = arith.constant 2 : index
    %5 = vector.load %arg0[%c0_7, %c2] : memref<4x686xbf16, #tpu.memory_space<vmem>>, vector<4x648xbf16>
    %c8 = arith.constant 8 : index
    %c0_8 = arith.constant 0 : index
    %6 = vector.load %arg9[%c8, %c0_8] : memref<36x648xbf16, #tpu.memory_space<vmem>>, vector<4x648xbf16>
    tpu.vector_store %arg9[%c8, %c0_8], %5 {strides = array<i32>} : memref<36x648xbf16, #tpu.memory_space<vmem>>, vector<4x648xbf16>,
    %c0_9 = arith.constant 0 : index
    %c18 = arith.constant 18 : index
    %7 = vector.load %arg0[%c0_9, %c18] : memref<4x686xbf16, #tpu.memory_space<vmem>>, vector<4x648xbf16>
    %c12 = arith.constant 12 : index
    %c0_10 = arith.constant 0 : index
    %8 = vector.load %arg9[%c12, %c0_10] : memref<36x648xbf16, #tpu.memory_space<vmem>>, vector<4x648xbf16>
    tpu.vector_store %arg9[%c12, %c0_10], %7 {strides = array<i32>} : memref<36x648xbf16, #tpu.memory_space<vmem>>, vector<4x648xbf16>,
    %c0_11 = arith.constant 0 : index
    %c19 = arith.constant 19 : index
    %9 = vector.load %arg0[%c0_11, %c19] : memref<4x686xbf16, #tpu.memory_space<vmem>>, vector<4x648xbf16>
    %c16 = arith.constant 16 : index
    %c0_12 = arith.constant 0 : index
    %10 = vector.load %arg9[%c16, %c0_12] : memref<36x648xbf16, #tpu.memory_space<vmem>>, vector<4x648xbf16>
    tpu.vector_store %arg9[%c16, %c0_12], %9 {strides = array<i32>} : memref<36x648xbf16, #tpu.memory_space<vmem>>, vector<4x648xbf16>,
    %c0_13 = arith.constant 0 : index
    %c20 = arith.constant 20 : index
    %11 = vector.load %arg0[%c0_13, %c20] : memref<4x686xbf16, #tpu.memory_space<vmem>>, vector<4x648xbf16>
    %c20_14 = arith.constant 20 : index
    %c0_15 = arith.constant 0 : index
    %12 = vector.load %arg9[%c20_14, %c0_15] : memref<36x648xbf16, #tpu.memory_space<vmem>>, vector<4x648xbf16>
    tpu.vector_store %arg9[%c20_14, %c0_15], %11 {strides = array<i32>} : memref<36x648xbf16, #tpu.memory_space<vmem>>, vector<4x648xbf16>,
    %c0_16 = arith.constant 0 : index
    %c36 = arith.constant 36 : index
    %13 = vector.load %arg0[%c0_16, %c36] : memref<4x686xbf16, #tpu.memory_space<vmem>>, vector<4x648xbf16>
    %c24 = arith.constant 24 : index
    %c0_17 = arith.constant 0 : index
    %14 = vector.load %arg9[%c24, %c0_17] : memref<36x648xbf16, #tpu.memory_space<vmem>>, vector<4x648xbf16>
    tpu.vector_store %arg9[%c24, %c0_17], %13 {strides = array<i32>} : memref<36x648xbf16, #tpu.memory_space<vmem>>, vector<4x648xbf16>,
    %c0_18 = arith.constant 0 : index
    %c37 = arith.constant 37 : index
    %15 = vector.load %arg0[%c0_18, %c37] : memref<4x686xbf16, #tpu.memory_space<vmem>>, vector<4x648xbf16>
    %c28 = arith.constant 28 : index
    %c0_19 = arith.constant 0 : index
    %16 = vector.load %arg9[%c28, %c0_19] : memref<36x648xbf16, #tpu.memory_space<vmem>>, vector<4x648xbf16>
    tpu.vector_store %arg9[%c28, %c0_19], %15 {strides = array<i32>} : memref<36x648xbf16, #tpu.memory_space<vmem>>, vector<4x648xbf16>,
    %c0_20 = arith.constant 0 : index
    %c38 = arith.constant 38 : index
    %17 = vector.load %arg0[%c0_20, %c38] : memref<4x686xbf16, #tpu.memory_space<vmem>>, vector<4x648xbf16>
    %c32 = arith.constant 32 : index
    %c0_21 = arith.constant 0 : index
    %18 = vector.load %arg9[%c32, %c0_21] : memref<36x648xbf16, #tpu.memory_space<vmem>>, vector<4x648xbf16>
    tpu.vector_store %arg9[%c32, %c0_21], %17 {strides = array<i32>} : memref<36x648xbf16, #tpu.memory_space<vmem>>, vector<4x648xbf16>,
    %c0_22 = arith.constant 0 : index
    %c0_23 = arith.constant 0 : index
    %19 = vector.load %arg2[%c0_22, %c0_23] : memref<8x36xbf16, #tpu.memory_space<vmem>>, vector<8x36xbf16>
    %c0_24 = arith.constant 0 : index
    %c0_25 = arith.constant 0 : index
    %20 = vector.load %arg9[%c0_24, %c0_25] : memref<36x648xbf16, #tpu.memory_space<vmem>>, vector<36x648xbf16>
    %cst = arith.constant dense<0.000000e+00> : vector<8x648xf32>
    %21 = tpu.matmul %19, %20, %cst {dimension_numbers = #tpu.dot_dimension_numbers<[1], [0], [0], [1], [0, 0, 1, 1], [], []>} : vector<8x36xbf16>, vector<36x648xbf16>, vector<8x648xf32> -> vector<8x648xf32>
    %22 = vector.broadcast %0 : vector<1x648xf32> to vector<8x648xf32>
    %23 = arith.mulf %21, %22 : vector<8x648xf32>
    %cst_26 = arith.constant dense<0.000000e+00> : vector<8xf32>
    %24 = vector.multi_reduction <add>, %23, %cst_26 [1] : vector<8x648xf32> to vector<8xf32>
    %25 = vector.shape_cast %24 : vector<8xf32> to vector<8x1xf32>
    %26 = arith.mulf %23, %21 : vector<8x648xf32>
    %cst_27 = arith.constant dense<0.000000e+00> : vector<8xf32>
    %27 = vector.multi_reduction <add>, %26, %cst_27 [1] : vector<8x648xf32> to vector<8xf32>
    %28 = vector.shape_cast %27 : vector<8xf32> to vector<8x1xf32>
    %cst_28 = arith.constant 0.001953125 : f32
    %29 = vector.broadcast %cst_28 : f32 to vector<8x1xf32>
    %30 = arith.mulf %25, %29 : vector<8x1xf32>
    %cst_29 = arith.constant 0.001953125 : f32
    %31 = vector.broadcast %cst_29 : f32 to vector<8x1xf32>
    %32 = arith.mulf %28, %31 : vector<8x1xf32>
    %33 = arith.mulf %30, %30 : vector<8x1xf32>
    %34 = arith.subf %32, %33 : vector<8x1xf32>
    %cst_30 = arith.constant 0.000000e+00 : f32
    %35 = vector.broadcast %cst_30 : f32 to vector<8x1xf32>
    %36 = arith.maximumf %34, %35 : vector<8x1xf32>
    %c0_31 = arith.constant 0 : index
    %c0_32 = arith.constant 0 : index
    %37 = vector.load %arg3[%c0_31, %c0_32] : memref<8x1xf32, #tpu.memory_space<vmem>>, vector<8x1xf32>
    %cst_33 = arith.constant 9.99999974E-6 : f32
    %38 = vector.broadcast %cst_33 : f32 to vector<8x1xf32>
    %39 = arith.addf %36, %38 : vector<8x1xf32>
    %40 = math.rsqrt %39 : vector<8x1xf32>
    %41 = arith.mulf %37, %40 : vector<8x1xf32>
    %c0_34 = arith.constant 0 : index
    %c0_35 = arith.constant 0 : index
    %42 = vector.load %arg4[%c0_34, %c0_35] : memref<8x1xf32, #tpu.memory_space<vmem>>, vector<8x1xf32>
    %43 = arith.mulf %30, %41 : vector<8x1xf32>
    %44 = arith.subf %42, %43 : vector<8x1xf32>
    %45 = vector.broadcast %41 : vector<8x1xf32> to vector<8x648xf32>
    %46 = arith.mulf %21, %45 : vector<8x648xf32>
    %47 = vector.broadcast %44 : vector<8x1xf32> to vector<8x648xf32>
    %48 = arith.addf %46, %47 : vector<8x648xf32>
    %cst_36 = arith.constant 0.000000e+00 : f32
    %49 = vector.broadcast %cst_36 : f32 to vector<8x648xf32>
    %50 = arith.maximumf %48, %49 : vector<8x648xf32>
    %51 = vector.broadcast %0 : vector<1x648xf32> to vector<8x648xf32>
    %52 = arith.mulf %50, %51 : vector<8x648xf32>
    %cst_37 = arith.constant 0.000000e+00 : bf16
    %53 = vector.broadcast %cst_37 : bf16 to vector<8x19xbf16>
    %c0_38 = arith.constant 0 : index
    %c0_39 = arith.constant 0 : index
    %54 = vector.load %arg10[%c0_38, %c0_39] : memref<8x686xbf16, #tpu.memory_space<vmem>>, vector<8x19xbf16>
    tpu.vector_store %arg10[%c0_38, %c0_39], %53 {strides = array<i32>} : memref<8x686xbf16, #tpu.memory_space<vmem>>, vector<8x19xbf16>,
    %cst_40 = arith.constant 0.000000e+00 : bf16
    %55 = vector.broadcast %cst_40 : bf16 to vector<8x19xbf16>
    %c0_41 = arith.constant 0 : index
    %c667 = arith.constant 667 : index
    %56 = vector.load %arg10[%c0_41, %c667] : memref<8x686xbf16, #tpu.memory_space<vmem>>, vector<8x19xbf16>
    tpu.vector_store %arg10[%c0_41, %c667], %55 {strides = array<i32>} : memref<8x686xbf16, #tpu.memory_space<vmem>>, vector<8x19xbf16>,
    %57 = arith.truncf %52 : vector<8x648xf32> to vector<8x648xbf16>
    %c0_42 = arith.constant 0 : index
    %c19_43 = arith.constant 19 : index
    %58 = vector.load %arg10[%c0_42, %c19_43] : memref<8x686xbf16, #tpu.memory_space<vmem>>, vector<8x648xbf16>
    tpu.vector_store %arg10[%c0_42, %c19_43], %57 {strides = array<i32>} : memref<8x686xbf16, #tpu.memory_space<vmem>>, vector<8x648xbf16>,
    %c0_44 = arith.constant 0 : index
    %c0_45 = arith.constant 0 : index
    %59 = vector.load %arg10[%c0_44, %c0_45] : memref<8x686xbf16, #tpu.memory_space<vmem>>, vector<8x648xbf16>
    %c0_46 = arith.constant 0 : index
    %c0_47 = arith.constant 0 : index
    %60 = vector.load %arg11[%c0_46, %c0_47] : memref<72x648xbf16, #tpu.memory_space<vmem>>, vector<8x648xbf16>
    tpu.vector_store %arg11[%c0_46, %c0_47], %59 {strides = array<i32>} : memref<72x648xbf16, #tpu.memory_space<vmem>>, vector<8x648xbf16>,
    %c0_48 = arith.constant 0 : index
    %c1_49 = arith.constant 1 : index
    %61 = vector.load %arg10[%c0_48, %c1_49] : memref<8x686xbf16, #tpu.memory_space<vmem>>, vector<8x648xbf16>
    %c8_50 = arith.constant 8 : index
    %c0_51 = arith.constant 0 : index
    %62 = vector.load %arg11[%c8_50, %c0_51] : memref<72x648xbf16, #tpu.memory_space<vmem>>, vector<8x648xbf16>
    tpu.vector_store %arg11[%c8_50, %c0_51], %61 {strides = array<i32>} : memref<72x648xbf16, #tpu.memory_space<vmem>>, vector<8x648xbf16>,
    %c0_52 = arith.constant 0 : index
    %c2_53 = arith.constant 2 : index
    %63 = vector.load %arg10[%c0_52, %c2_53] : memref<8x686xbf16, #tpu.memory_space<vmem>>, vector<8x648xbf16>
    %c16_54 = arith.constant 16 : index
    %c0_55 = arith.constant 0 : index
    %64 = vector.load %arg11[%c16_54, %c0_55] : memref<72x648xbf16, #tpu.memory_space<vmem>>, vector<8x648xbf16>
    tpu.vector_store %arg11[%c16_54, %c0_55], %63 {strides = array<i32>} : memref<72x648xbf16, #tpu.memory_space<vmem>>, vector<8x648xbf16>,
    %c0_56 = arith.constant 0 : index
    %c18_57 = arith.constant 18 : index
    %65 = vector.load %arg10[%c0_56, %c18_57] : memref<8x686xbf16, #tpu.memory_space<vmem>>, vector<8x648xbf16>
    %c24_58 = arith.constant 24 : index
    %c0_59 = arith.constant 0 : index
    %66 = vector.load %arg11[%c24_58, %c0_59] : memref<72x648xbf16, #tpu.memory_space<vmem>>, vector<8x648xbf16>
    tpu.vector_store %arg11[%c24_58, %c0_59], %65 {strides = array<i32>} : memref<72x648xbf16, #tpu.memory_space<vmem>>, vector<8x648xbf16>,
    %c0_60 = arith.constant 0 : index
    %c19_61 = arith.constant 19 : index
    %67 = vector.load %arg10[%c0_60, %c19_61] : memref<8x686xbf16, #tpu.memory_space<vmem>>, vector<8x648xbf16>
    %c32_62 = arith.constant 32 : index
    %c0_63 = arith.constant 0 : index
    %68 = vector.load %arg11[%c32_62, %c0_63] : memref<72x648xbf16, #tpu.memory_space<vmem>>, vector<8x648xbf16>
    tpu.vector_store %arg11[%c32_62, %c0_63], %67 {strides = array<i32>} : memref<72x648xbf16, #tpu.memory_space<vmem>>, vector<8x648xbf16>,
    %c0_64 = arith.constant 0 : index
    %c20_65 = arith.constant 20 : index
    %69 = vector.load %arg10[%c0_64, %c20_65] : memref<8x686xbf16, #tpu.memory_space<vmem>>, vector<8x648xbf16>
    %c40 = arith.constant 40 : index
    %c0_66 = arith.constant 0 : index
    %70 = vector.load %arg11[%c40, %c0_66] : memref<72x648xbf16, #tpu.memory_space<vmem>>, vector<8x648xbf16>
    tpu.vector_store %arg11[%c40, %c0_66], %69 {strides = array<i32>} : memref<72x648xbf16, #tpu.memory_space<vmem>>, vector<8x648xbf16>,
    %c0_67 = arith.constant 0 : index
    %c36_68 = arith.constant 36 : index
    %71 = vector.load %arg10[%c0_67, %c36_68] : memref<8x686xbf16, #tpu.memory_space<vmem>>, vector<8x648xbf16>
    %c48 = arith.constant 48 : index
    %c0_69 = arith.constant 0 : index
    %72 = vector.load %arg11[%c48, %c0_69] : memref<72x648xbf16, #tpu.memory_space<vmem>>, vector<8x648xbf16>
    tpu.vector_store %arg11[%c48, %c0_69], %71 {strides = array<i32>} : memref<72x648xbf16, #tpu.memory_space<vmem>>, vector<8x648xbf16>,
    %c0_70 = arith.constant 0 : index
    %c37_71 = arith.constant 37 : index
    %73 = vector.load %arg10[%c0_70, %c37_71] : memref<8x686xbf16, #tpu.memory_space<vmem>>, vector<8x648xbf16>
    %c56 = arith.constant 56 : index
    %c0_72 = arith.constant 0 : index
    %74 = vector.load %arg11[%c56, %c0_72] : memref<72x648xbf16, #tpu.memory_space<vmem>>, vector<8x648xbf16>
    tpu.vector_store %arg11[%c56, %c0_72], %73 {strides = array<i32>} : memref<72x648xbf16, #tpu.memory_space<vmem>>, vector<8x648xbf16>,
    %c0_73 = arith.constant 0 : index
    %c38_74 = arith.constant 38 : index
    %75 = vector.load %arg10[%c0_73, %c38_74] : memref<8x686xbf16, #tpu.memory_space<vmem>>, vector<8x648xbf16>
    %c64 = arith.constant 64 : index
    %c0_75 = arith.constant 0 : index
    %76 = vector.load %arg11[%c64, %c0_75] : memref<72x648xbf16, #tpu.memory_space<vmem>>, vector<8x648xbf16>
    tpu.vector_store %arg11[%c64, %c0_75], %75 {strides = array<i32>} : memref<72x648xbf16, #tpu.memory_space<vmem>>, vector<8x648xbf16>,
    %c0_76 = arith.constant 0 : index
    %c0_77 = arith.constant 0 : index
    %77 = vector.load %arg5[%c0_76, %c0_77] : memref<8x72xbf16, #tpu.memory_space<vmem>>, vector<8x72xbf16>
    %c0_78 = arith.constant 0 : index
    %c0_79 = arith.constant 0 : index
    %78 = vector.load %arg11[%c0_78, %c0_79] : memref<72x648xbf16, #tpu.memory_space<vmem>>, vector<72x648xbf16>
    %cst_80 = arith.constant dense<0.000000e+00> : vector<8x648xf32>
    %79 = tpu.matmul %77, %78, %cst_80 {dimension_numbers = #tpu.dot_dimension_numbers<[1], [0], [0], [1], [0, 0, 1, 1], [], []>} : vector<8x72xbf16>, vector<72x648xbf16>, vector<8x648xf32> -> vector<8x648xf32>
    %80 = vector.broadcast %0 : vector<1x648xf32> to vector<8x648xf32>
    %81 = arith.mulf %79, %80 : vector<8x648xf32>
    %cst_81 = arith.constant dense<0.000000e+00> : vector<8xf32>
    %82 = vector.multi_reduction <add>, %81, %cst_81 [1] : vector<8x648xf32> to vector<8xf32>
    %83 = vector.shape_cast %82 : vector<8xf32> to vector<8x1xf32>
    %84 = arith.mulf %81, %79 : vector<8x648xf32>
    %cst_82 = arith.constant dense<0.000000e+00> : vector<8xf32>
    %85 = vector.multi_reduction <add>, %84, %cst_82 [1] : vector<8x648xf32> to vector<8xf32>
    %86 = vector.shape_cast %85 : vector<8xf32> to vector<8x1xf32>
    %cst_83 = arith.constant 0.001953125 : f32
    %87 = vector.broadcast %cst_83 : f32 to vector<8x1xf32>
    %88 = arith.mulf %83, %87 : vector<8x1xf32>
    %cst_84 = arith.constant 0.001953125 : f32
    %89 = vector.broadcast %cst_84 : f32 to vector<8x1xf32>
    %90 = arith.mulf %86, %89 : vector<8x1xf32>
    %91 = arith.mulf %88, %88 : vector<8x1xf32>
    %92 = arith.subf %90, %91 : vector<8x1xf32>
    %cst_85 = arith.constant 0.000000e+00 : f32
    %93 = vector.broadcast %cst_85 : f32 to vector<8x1xf32>
    %94 = arith.maximumf %92, %93 : vector<8x1xf32>
    %c0_86 = arith.constant 0 : index
    %c0_87 = arith.constant 0 : index
    %95 = vector.load %arg6[%c0_86, %c0_87] : memref<8x1xf32, #tpu.memory_space<vmem>>, vector<8x1xf32>
    %cst_88 = arith.constant 9.99999974E-6 : f32
    %96 = vector.broadcast %cst_88 : f32 to vector<8x1xf32>
    %97 = arith.addf %94, %96 : vector<8x1xf32>
    %98 = math.rsqrt %97 : vector<8x1xf32>
    %99 = arith.mulf %95, %98 : vector<8x1xf32>
    %c0_89 = arith.constant 0 : index
    %c0_90 = arith.constant 0 : index
    %100 = vector.load %arg7[%c0_89, %c0_90] : memref<8x1xf32, #tpu.memory_space<vmem>>, vector<8x1xf32>
    %101 = arith.mulf %88, %99 : vector<8x1xf32>
    %102 = arith.subf %100, %101 : vector<8x1xf32>
    %103 = vector.broadcast %99 : vector<8x1xf32> to vector<8x648xf32>
    %104 = arith.mulf %79, %103 : vector<8x648xf32>
    %105 = vector.broadcast %102 : vector<8x1xf32> to vector<8x648xf32>
    %106 = arith.addf %104, %105 : vector<8x648xf32>
    %cst_91 = arith.constant 0.000000e+00 : f32
    %107 = vector.broadcast %cst_91 : f32 to vector<8x648xf32>
    %108 = arith.maximumf %106, %107 : vector<8x648xf32>
    %c0_92 = arith.constant 0 : index
    %c0_93 = arith.constant 0 : index
    %109 = vector.load %arg8[%c0_92, %c0_93] : memref<8x648xf32, #tpu.memory_space<vmem>>, vector<8x648xf32>
    tpu.vector_store %arg8[%c0_92, %c0_93], %108 {strides = array<i32>} : memref<8x648xf32, #tpu.memory_space<vmem>>, vector<8x648xf32>,
    return
  }
}

</mosaic_0001>

<llo_original>
// kernel: unet_block_forward.1
$region0: #{unet_block_forward.1}
  #allocation0 [shape = 'u32[]', space=smem, size = 0x4, offset = 0x4, fixed_abs, tag = 'smem constant byte address 0x4 - core index']
  #allocation1 [shape = 'u32[144,128]{1,0:T(1,128)}', space=vmem, size = 0x12000, scoped, tag = 'internal scratch']
  #allocation2 [shape = 'bf16[36,648]{1,0:T(8,128)(2,1)}', space=vmem, size = 0xf000, scoped, tag = 'scratch operand']
  #allocation3 [shape = 'bf16[8,686]{1,0:T(8,128)(2,1)}', space=vmem, size = 0x3000, scoped, tag = 'scratch operand']
  #allocation4 [shape = 'bf16[72,648]{1,0:T(8,128)(2,1)}', space=vmem, size = 0x1b000, scoped, tag = 'scratch operand']
  %s0 = inlined_call_operand.vmem [shape: bf16[4,686], index: 0, kind: input, shape index: {}]
  %s1 = inlined_call_operand.vmem [shape: f32[1,648], index: 1, kind: input, shape index: {}]
  %s2 = inlined_call_operand.vmem [shape: bf16[8,36], index: 2, kind: input, shape index: {}]
  %s3 = inlined_call_operand.vmem [shape: f32[8,1], index: 3, kind: input, shape index: {}]
  %s4 = inlined_call_operand.vmem [shape: f32[8,1], index: 4, kind: input, shape index: {}]
  %s5 = inlined_call_operand.vmem [shape: bf16[8,72], index: 5, kind: input, shape index: {}]
  %s6 = inlined_call_operand.vmem [shape: f32[8,1], index: 6, kind: input, shape index: {}]
  %s7 = inlined_call_operand.vmem [shape: f32[8,1], index: 7, kind: input, shape index: {}]
  %s8 = inlined_call_operand.vmem [shape: f32[8,648], index: 8, kind: output, shape index: {}]
  %s9 = sld [smem:[#allocation0]]
  $region42: #{unet_block_forward.1} parent=0
    _
  %s11 = ssub.s32 1, %s9
  %s12 = scalar_select 0, %s11, %s9
  // Predicated region
  $region2: #{unet_block_forward.1} parent=0 // pred_check
    _
  $region3: #{unet_block_forward.1} parent=0 // pred_check_branch
    %14 = sbr.rel (0) target = $region5
  $region4: #{unet_block_forward.1} parent=0 // pred_region
    _
  $region5: #{unet_block_forward.1} parent=0 // pred_fallthru
    _
  // Predicated region
  $region6: #{unet_block_forward.1} parent=0 // pred_check
    _
  $region7: #{unet_block_forward.1} parent=0 // pred_check_branch
    %16 = sbr.rel (0) target = $region9
  $region8: #{unet_block_forward.1} parent=0 // pred_region
    _
  $region9: #{unet_block_forward.1} parent=0 // pred_fallthru
    _
  // Predicated region
  $region10: #{unet_block_forward.1} parent=0 // pred_check
    _
  $region11: #{unet_block_forward.1} parent=0 // pred_check_branch
    %18 = sbr.rel (0) target = $region13
  $region12: #{unet_block_forward.1} parent=0 // pred_region
    _
  $region13: #{unet_block_forward.1} parent=0 // pred_fallthru
    _
  // Predicated region
  $region14: #{unet_block_forward.1} parent=0 // pred_check
    _
  $region15: #{unet_block_forward.1} parent=0 // pred_check_branch
    %20 = sbr.rel (0) target = $region17
  $region16: #{unet_block_forward.1} parent=0 // pred_region
    _
  $region17: #{unet_block_forward.1} parent=0 // pred_fallthru
    _
  // Predicated region
  $region18: #{unet_block_forward.1} parent=0 // pred_check
    _
  $region19: #{unet_block_forward.1} parent=0 // pred_check_branch
    %22 = sbr.rel (0) target = $region21
  $region20: #{unet_block_forward.1} parent=0 // pred_region
    _
  $region21: #{unet_block_forward.1} parent=0 // pred_fallthru
    _
  // Predicated region
  $region22: #{unet_block_forward.1} parent=0 // pred_check
    _
  $region23: #{unet_block_forward.1} parent=0 // pred_check_branch
    %24 = sbr.rel (0) target = $region25
  $region24: #{unet_block_forward.1} parent=0 // pred_region
    _
  $region25: #{unet_block_forward.1} parent=0 // pred_fallthru
    _
  // Predicated region
  $region26: #{unet_block_forward.1} parent=0 // pred_check
    _
  $region27: #{unet_block_forward.1} parent=0 // pred_check_branch
    %26 = sbr.rel (0) target = $region29
  $region28: #{unet_block_forward.1} parent=0 // pred_region
    _
  $region29: #{unet_block_forward.1} parent=0 // pred_fallthru
    _
  // Predicated region
  $region30: #{unet_block_forward.1} parent=0 // pred_check
    _
  $region31: #{unet_block_forward.1} parent=0 // pred_check_branch
    %28 = sbr.rel (0) target = $region33
  $region32: #{unet_block_forward.1} parent=0 // pred_region
    _
  $region33: #{unet_block_forward.1} parent=0 // pred_fallthru
    _
  %v30 = vld [vmem:[%s1] sm:$0x3f]
  %v31 = vld [vmem:[%s0] sm:$0xff]
  %v32 = vld [vmem:[%s0 + $0x8] sm:$0xf]
  %v35 = vcombine.high %v31, %v31
  %v37 = vunpack.c.l.s4 1983009808
  %v38 = vunpack.c.0.s8 %v37
  %v39 = vlaneseq
  %v40 = vshrl.u32 %v39, 7
  %v41 = vsub.s32 %v38, %v40
  %v42 = vrot.slane %v31, %v41
  %v44 = vunpack.c.l.s4 1983009808
  %v45 = vunpack.c.0.s8 %v44
  %v46 = vlaneseq
  %v47 = vshrl.u32 %v46, 7
  %v48 = vsub.s32 %v45, %v47
  %v49 = vrot.slane %v35, %v48
  %v51 = vunpack.c.l.s4 1983009808
  %v52 = vunpack.c.0.s8 %v51
  %v53 = vlaneseq
  %v54 = vshrl.u32 %v53, 7
  %v55 = vsub.s32 %v52, %v54
  %v56 = vrot.slane %v32, %v55
  %60 = vst [vmem:[#allocation2] sm:$0x33] %v42
  %61 = vst [vmem:[#allocation2 + $0x8] sm:$0x33] %v49
  %vm62 = vcmask 1041408
  %vm63 = vcmask 62468
  %vm64 = vmor %vm63, %vm62
  %65 = vst.msk [vmem:[#allocation2 + $0x10] sm:$0x33] %vm64, %v56
  %v66 = vld [vmem:[%s0] sm:$0xff]
  %v67 = vld [vmem:[%s0 + $0x8] sm:$0xf]
  %v70 = vcombine.low %v66, %v66
  %v72 = vunpack.c.l.s4 1983009808
  %v73 = vunpack.c.0.s8 %v72
  %v74 = vlaneseq
  %v75 = vshrl.u32 %v74, 7
  %v76 = vsub.s32 %v73, %v75
  %v77 = vrot.slane %v70, %v76
  %v79 = vunpack.c.l.s4 1983009808
  %v80 = vunpack.c.0.s8 %v79
  %v81 = vlaneseq
  %v82 = vshrl.u32 %v81, 7
  %v83 = vsub.s32 %v80, %v82
  %v84 = vrot.slane %v66, %v83
  %v85 = vcombine.low %v67, %v67
  %v87 = vunpack.c.l.s4 1983009808
  %v88 = vunpack.c.0.s8 %v87
  %v89 = vlaneseq
  %v90 = vshrl.u32 %v89, 7
  %v91 = vsub.s32 %v88, %v90
  %v92 = vrot.slane %v85, %v91
  %93 = vrot.lane.b32.xlu0 %v77, 127
  %v94 = vpop.permute.xlu0 %93
  %95 = vrot.lane.b32.xlu0 %v84, 127
  %v96 = vpop.permute.xlu0 %95
  %97 = vrot.lane.b32.xlu0 %v92, 127
  %v98 = vpop.permute.xlu0 %97
  %v99 = vrot.slane %v94, 4
  %v100 = vrot.slane %v96, 4
  %v101 = vrot.slane %v98, 4
  %vm102 = vcmask 1043456
  %v103 = vsel %vm102, %v99, %v100
  %vm104 = vcmask 1039360
  %v105 = vsel %vm104, %v94, %v103
  %v106 = vsel %vm102, %v100, %v101
  %v107 = vsel %vm104, %v96, %v106
  %v108 = vsel %vm104, %v98, %v101
  %112 = vst [vmem:[#allocation2] sm:$0xcc] %v105
  %113 = vst [vmem:[#allocation2 + $0x8] sm:$0xcc] %v107
  %vm114 = vcmask 1043458
  %vm115 = vcmask 64518
  %vm116 = vmor %vm115, %vm114
  %117 = vst.msk [vmem:[#allocation2 + $0x10] sm:$0xcc] %vm116, %v108
  %v118 = vld [vmem:[%s0] sm:$0xff]
  %v119 = vld [vmem:[%s0 + $0x8] sm:$0xf]
  %v122 = vcombine.high %v118, %v118
  %v124 = vunpack.c.l.s4 1983009808
  %v125 = vunpack.c.0.s8 %v124
  %v126 = vlaneseq
  %v127 = vshrl.u32 %v126, 7
  %v128 = vsub.s32 %v125, %v127
  %v129 = vrot.slane %v118, %v128
  %v131 = vunpack.c.l.s4 1983009808
  %v132 = vunpack.c.0.s8 %v131
  %v133 = vlaneseq
  %v134 = vshrl.u32 %v133, 7
  %v135 = vsub.s32 %v132, %v134
  %v136 = vrot.slane %v122, %v135
  %v138 = vunpack.c.l.s4 1983009808
  %v139 = vunpack.c.0.s8 %v138
  %v140 = vlaneseq
  %v141 = vshrl.u32 %v140, 7
  %v142 = vsub.s32 %v139, %v141
  %v143 = vrot.slane %v119, %v142
  %144 = vrot.lane.b32.xlu0 %v129, 126
  %v145 = vpop.permute.xlu0 %144
  %146 = vrot.lane.b32.xlu0 %v136, 126
  %v147 = vpop.permute.xlu0 %146
  %148 = vrot.lane.b32.xlu0 %v143, 126
  %v149 = vpop.permute.xlu0 %148
  %v150 = vrot.slane %v145, 4
  %v151 = vrot.slane %v147, 4
  %v152 = vrot.slane %v149, 4
  %v153 = vsel %vm102, %v150, %v151
  %vm154 = vcmask 1031168
  %v155 = vsel %vm154, %v145, %v153
  %v156 = vsel %vm102, %v151, %v152
  %v157 = vsel %vm154, %v147, %v156
  %v158 = vsel %vm154, %v149, %v152
  %162 = vst [vmem:[#allocation2 + $0x18] sm:$0x33] %v155
  %163 = vst [vmem:[#allocation2 + $0x20] sm:$0x33] %v157
  %164 = vst.msk [vmem:[#allocation2 + $0x28] sm:$0x33] %vm64, %v158
  %v165 = vld [vmem:[%s0] sm:$0xff]
  %v166 = vld [vmem:[%s0 + $0x8] sm:$0xf]
  %v169 = vcombine.low %v165, %v165
  %v171 = vunpack.c.l.s4 1983009808
  %v172 = vunpack.c.0.s8 %v171
  %v173 = vlaneseq
  %v174 = vshrl.u32 %v173, 7
  %v175 = vsub.s32 %v172, %v174
  %v176 = vrot.slane %v169, %v175
  %v178 = vunpack.c.l.s4 1983009808
  %v179 = vunpack.c.0.s8 %v178
  %v180 = vlaneseq
  %v181 = vshrl.u32 %v180, 7
  %v182 = vsub.s32 %v179, %v181
  %v183 = vrot.slane %v165, %v182
  %v184 = vcombine.low %v166, %v166
  %v186 = vunpack.c.l.s4 1983009808
  %v187 = vunpack.c.0.s8 %v186
  %v188 = vlaneseq
  %v189 = vshrl.u32 %v188, 7
  %v190 = vsub.s32 %v187, %v189
  %v191 = vrot.slane %v184, %v190
  %192 = vrot.lane.b32.xlu0 %v176, 110
  %v193 = vpop.permute.xlu0 %192
  %194 = vrot.lane.b32.xlu0 %v183, 110
  %v195 = vpop.permute.xlu0 %194
  %196 = vrot.lane.b32.xlu0 %v191, 110
  %v197 = vpop.permute.xlu0 %196
  %v198 = vrot.slane %v193, 4
  %v199 = vrot.slane %v195, 4
  %v200 = vrot.slane %v197, 4
  %v201 = vsel %vm102, %v198, %v199
  %vm202 = vcmask 900096
  %v203 = vsel %vm202, %v193, %v201
  %v204 = vsel %vm102, %v199, %v200
  %v205 = vsel %vm202, %v195, %v204
  %v206 = vsel %vm202, %v197, %v200
  %210 = vst [vmem:[#allocation2 + $0x18] sm:$0xcc] %v203
  %211 = vst [vmem:[#allocation2 + $0x20] sm:$0xcc] %v205
  %212 = vst.msk [vmem:[#allocation2 + $0x28] sm:$0xcc] %vm116, %v206
  %v213 = vld [vmem:[%s0] sm:$0xff]
  %v214 = vld [vmem:[%s0 + $0x8] sm:$0xf]
  %v217 = vcombine.high %v213, %v213
  %v219 = vunpack.c.l.s4 1983009808
  %v220 = vunpack.c.0.s8 %v219
  %v221 = vlaneseq
  %v222 = vshrl.u32 %v221, 7
  %v223 = vsub.s32 %v220, %v222
  %v224 = vrot.slane %v213, %v223
  %v226 = vunpack.c.l.s4 1983009808
  %v227 = vunpack.c.0.s8 %v226
  %v228 = vlaneseq
  %v229 = vshrl.u32 %v228, 7
  %v230 = vsub.s32 %v227, %v229
  %v231 = vrot.slane %v217, %v230
  %v233 = vunpack.c.l.s4 1983009808
  %v234 = vunpack.c.0.s8 %v233
  %v235 = vlaneseq
  %v236 = vshrl.u32 %v235, 7
  %v237 = vsub.s32 %v234, %v236
  %v238 = vrot.slane %v214, %v237
  %239 = vrot.lane.b32.xlu0 %v224, 109
  %v240 = vpop.permute.xlu0 %239
  %241 = vrot.lane.b32.xlu0 %v231, 109
  %v242 = vpop.permute.xlu0 %241
  %243 = vrot.lane.b32.xlu0 %v238, 109
  %v244 = vpop.permute.xlu0 %243
  %v245 = vrot.slane %v240, 4
  %v246 = vrot.slane %v242, 4
  %v247 = vrot.slane %v244, 4
  %v248 = vsel %vm102, %v245, %v246
  %vm249 = vcmask 891904
  %v250 = vsel %vm249, %v240, %v248
  %v251 = vsel %vm102, %v246, %v247
  %v252 = vsel %vm249, %v242, %v251
  %v253 = vsel %vm249, %v244, %v247
  %257 = vst [vmem:[#allocation2 + $0x30] sm:$0x33] %v250
  %258 = vst [vmem:[#allocation2 + $0x38] sm:$0x33] %v252
  %259 = vst.msk [vmem:[#allocation2 + $0x40] sm:$0x33] %vm64, %v253
  %v260 = vld [vmem:[%s0] sm:$0xff]
  %v261 = vld [vmem:[%s0 + $0x8] sm:$0xf]
  %v264 = vcombine.low %v260, %v260
  %v266 = vunpack.c.l.s4 1983009808
  %v267 = vunpack.c.0.s8 %v266
  %v268 = vlaneseq
  %v269 = vshrl.u32 %v268, 7
  %v270 = vsub.s32 %v267, %v269
  %v271 = vrot.slane %v264, %v270
  %v273 = vunpack.c.l.s4 1983009808
  %v274 = vunpack.c.0.s8 %v273
  %v275 = vlaneseq
  %v276 = vshrl.u32 %v275, 7
  %v277 = vsub.s32 %v274, %v276
  %v278 = vrot.slane %v260, %v277
  %v279 = vcombine.low %v261, %v261
  %v281 = vunpack.c.l.s4 1983009808
  %v282 = vunpack.c.0.s8 %v281
  %v283 = vlaneseq
  %v284 = vshrl.u32 %v283, 7
  %v285 = vsub.s32 %v282, %v284
  %v286 = vrot.slane %v279, %v285
  %287 = vrot.lane.b32.xlu0 %v271, 108
  %v288 = vpop.permute.xlu0 %287
  %289 = vrot.lane.b32.xlu0 %v278, 108
  %v290 = vpop.permute.xlu0 %289
  %291 = vrot.lane.b32.xlu0 %v286, 108
  %v292 = vpop.permute.xlu0 %291
  %v293 = vrot.slane %v288, 4
  %v294 = vrot.slane %v290, 4
  %v295 = vrot.slane %v292, 4
  %v296 = vsel %vm102, %v293, %v294
  %vm297 = vcmask 883712
  %v298 = vsel %vm297, %v288, %v296
  %v299 = vsel %vm102, %v294, %v295
  %v300 = vsel %vm297, %v290, %v299
  %v301 = vsel %vm297, %v292, %v295
  %305 = vst [vmem:[#allocation2 + $0x30] sm:$0xcc] %v298
  %306 = vst [vmem:[#allocation2 + $0x38] sm:$0xcc] %v300
  %307 = vst.msk [vmem:[#allocation2 + $0x40] sm:$0xcc] %vm116, %v301
  %v308 = vld [vmem:[%s0] sm:$0xff]
  %v309 = vld [vmem:[%s0 + $0x8] sm:$0xf]
  %v312 = vcombine.high %v308, %v308
  %v314 = vunpack.c.l.s4 1983009808
  %v315 = vunpack.c.0.s8 %v314
  %v316 = vlaneseq
  %v317 = vshrl.u32 %v316, 7
  %v318 = vsub.s32 %v315, %v317
  %v319 = vrot.slane %v308, %v318
  %v321 = vunpack.c.l.s4 1983009808
  %v322 = vunpack.c.0.s8 %v321
  %v323 = vlaneseq
  %v324 = vshrl.u32 %v323, 7
  %v325 = vsub.s32 %v322, %v324
  %v326 = vrot.slane %v312, %v325
  %v328 = vunpack.c.l.s4 1983009808
  %v329 = vunpack.c.0.s8 %v328
  %v330 = vlaneseq
  %v331 = vshrl.u32 %v330, 7
  %v332 = vsub.s32 %v329, %v331
  %v333 = vrot.slane %v309, %v332
  %334 = vrot.lane.b32.xlu0 %v319, 92
  %v335 = vpop.permute.xlu0 %334
  %336 = vrot.lane.b32.xlu0 %v326, 92
  %v337 = vpop.permute.xlu0 %336
  %338 = vrot.lane.b32.xlu0 %v333, 92
  %v339 = vpop.permute.xlu0 %338
  %v340 = vrot.slane %v335, 4
  %v341 = vrot.slane %v337, 4
  %v342 = vrot.slane %v339, 4
  %v343 = vsel %vm102, %v340, %v341
  %vm344 = vcmask 752640
  %v345 = vsel %vm344, %v335, %v343
  %v346 = vsel %vm102, %v341, %v342
  %v347 = vsel %vm344, %v337, %v346
  %v348 = vsel %vm344, %v339, %v342
  %352 = vst [vmem:[#allocation2 + $0x48] sm:$0x33] %v345
  %353 = vst [vmem:[#allocation2 + $0x50] sm:$0x33] %v347
  %354 = vst.msk [vmem:[#allocation2 + $0x58] sm:$0x33] %vm64, %v348
  %v355 = vld [vmem:[%s0] sm:$0xff]
  %v356 = vld [vmem:[%s0 + $0x8] sm:$0xf]
  %v359 = vcombine.low %v355, %v355
  %v361 = vunpack.c.l.s4 1983009808
  %v362 = vunpack.c.0.s8 %v361
  %v363 = vlaneseq
  %v364 = vshrl.u32 %v363, 7
  %v365 = vsub.s32 %v362, %v364
  %v366 = vrot.slane %v359, %v365
  %v368 = vunpack.c.l.s4 1983009808
  %v369 = vunpack.c.0.s8 %v368
  %v370 = vlaneseq
  %v371 = vshrl.u32 %v370, 7
  %v372 = vsub.s32 %v369, %v371
  %v373 = vrot.slane %v355, %v372
  %v374 = vcombine.low %v356, %v356
  %v376 = vunpack.c.l.s4 1983009808
  %v377 = vunpack.c.0.s8 %v376
  %v378 = vlaneseq
  %v379 = vshrl.u32 %v378, 7
  %v380 = vsub.s32 %v377, %v379
  %v381 = vrot.slane %v374, %v380
  %382 = vrot.lane.b32.xlu0 %v366, 91
  %v383 = vpop.permute.xlu0 %382
  %384 = vrot.lane.b32.xlu0 %v373, 91
  %v385 = vpop.permute.xlu0 %384
  %386 = vrot.lane.b32.xlu0 %v381, 91
  %v387 = vpop.permute.xlu0 %386
  %v388 = vrot.slane %v383, 4
  %v389 = vrot.slane %v385, 4
  %v390 = vrot.slane %v387, 4
  %v391 = vsel %vm102, %v388, %v389
  %vm392 = vcmask 744448
  %v393 = vsel %vm392, %v383, %v391
  %v394 = vsel %vm102, %v389, %v390
  %v395 = vsel %vm392, %v385, %v394
  %v396 = vsel %vm392, %v387, %v390
  %400 = vst [vmem:[#allocation2 + $0x48] sm:$0xcc] %v393
  %401 = vst [vmem:[#allocation2 + $0x50] sm:$0xcc] %v395
  %402 = vst.msk [vmem:[#allocation2 + $0x58] sm:$0xcc] %vm116, %v396
  %v403 = vld [vmem:[%s0] sm:$0xff]
  %v404 = vld [vmem:[%s0 + $0x8] sm:$0xf]
  %v407 = vcombine.high %v403, %v403
  %v409 = vunpack.c.l.s4 1983009808
  %v410 = vunpack.c.0.s8 %v409
  %v411 = vlaneseq
  %v412 = vshrl.u32 %v411, 7
  %v413 = vsub.s32 %v410, %v412
  %v414 = vrot.slane %v403, %v413
  %v416 = vunpack.c.l.s4 1983009808
  %v417 = vunpack.c.0.s8 %v416
  %v418 = vlaneseq
  %v419 = vshrl.u32 %v418, 7
  %v420 = vsub.s32 %v417, %v419
  %v421 = vrot.slane %v407, %v420
  %v423 = vunpack.c.l.s4 1983009808
  %v424 = vunpack.c.0.s8 %v423
  %v425 = vlaneseq
  %v426 = vshrl.u32 %v425, 7
  %v427 = vsub.s32 %v424, %v426
  %v428 = vrot.slane %v404, %v427
  %429 = vrot.lane.b32.xlu0 %v414, 90
  %v430 = vpop.permute.xlu0 %429
  %431 = vrot.lane.b32.xlu0 %v421, 90
  %v432 = vpop.permute.xlu0 %431
  %433 = vrot.lane.b32.xlu0 %v428, 90
  %v434 = vpop.permute.xlu0 %433
  %v435 = vrot.slane %v430, 4
  %v436 = vrot.slane %v432, 4
  %v437 = vrot.slane %v434, 4
  %v438 = vsel %vm102, %v435, %v436
  %vm439 = vcmask 736256
  %v440 = vsel %vm439, %v430, %v438
  %v441 = vsel %vm102, %v436, %v437
  %v442 = vsel %vm439, %v432, %v441
  %v443 = vsel %vm439, %v434, %v437
  %447 = vst [vmem:[#allocation2 + $0x60] sm:$0x33] %v440
  %448 = vst [vmem:[#allocation2 + $0x68] sm:$0x33] %v442
  %449 = vst.msk [vmem:[#allocation2 + $0x70] sm:$0x33] %vm64, %v443
  %v450 = vld [vmem:[%s2] sm:$0xf]
  %v451 = vld [vmem:[#allocation2] sm:$0xff]
  %v452 = vld [vmem:[#allocation2 + $0x8] sm:$0xff]
  %v453 = vld [vmem:[#allocation2 + $0x10] sm:$0xff]
  %v454 = vld [vmem:[#allocation2 + $0x18] sm:$0xff]
  %v455 = vld [vmem:[#allocation2 + $0x20] sm:$0xff]
  %v456 = vld [vmem:[#allocation2 + $0x28] sm:$0xff]
  %v457 = vld [vmem:[#allocation2 + $0x30] sm:$0xff]
  %v458 = vld [vmem:[#allocation2 + $0x38] sm:$0xff]
  %v459 = vld [vmem:[#allocation2 + $0x40] sm:$0xff]
  %v460 = vld [vmem:[#allocation2 + $0x48] sm:$0xff]
  %v461 = vld [vmem:[#allocation2 + $0x50] sm:$0xff]
  %v462 = vld [vmem:[#allocation2 + $0x58] sm:$0xff]
  %v463 = vld [vmem:[#allocation2 + $0x60] sm:$0x33]
  %v464 = vld [vmem:[#allocation2 + $0x68] sm:$0x33]
  %v465 = vld [vmem:[#allocation2 + $0x70] sm:$0x33]
  %v481 = vunpack.c.l.b16 %v451
  %v482 = vunpack.c.h.b16 %v451
  %v483 = vunpack.c.l.b16 %v452
  %v484 = vunpack.c.h.b16 %v452
  %v485 = vunpack.c.l.b16 %v453
  %v486 = vunpack.c.h.b16 %v453
  %v487 = vunpack.c.l.b16 %v454
  %v488 = vunpack.c.h.b16 %v454
  %v489 = vunpack.c.l.b16 %v455
  %v490 = vunpack.c.h.b16 %v455
  %v491 = vunpack.c.l.b16 %v456
  %v492 = vunpack.c.h.b16 %v456
  %v493 = vunpack.c.l.b16 %v457
  %v494 = vunpack.c.h.b16 %v457
  %v495 = vunpack.c.l.b16 %v458
  %v496 = vunpack.c.h.b16 %v458
  %v497 = vunpack.c.l.b16 %v459
  %v498 = vunpack.c.h.b16 %v459
  %v499 = vunpack.c.l.b16 %v460
  %v500 = vunpack.c.h.b16 %v460
  %v501 = vunpack.c.l.b16 %v461
  %v502 = vunpack.c.h.b16 %v461
  %v503 = vunpack.c.l.b16 %v462
  %v504 = vunpack.c.h.b16 %v462
  %v505 = vunpack.c.l.b16 %v463
  %v506 = vunpack.c.h.b16 %v463
  %v507 = vunpack.c.l.b16 %v464
  %v508 = vunpack.c.h.b16 %v464
  %v509 = vunpack.c.l.b16 %v465
  %v510 = vunpack.c.h.b16 %v465
  %v511 = vpack.c.b16 %v487, %v481
  %v512 = vpack.c.b16 %v488, %v482
  %v513 = vpack.c.b16 %v489, %v483
  %v514 = vpack.c.b16 %v490, %v484
  %v515 = vpack.c.b16 %v491, %v485
  %v516 = vpack.c.b16 %v492, %v486
  %v517 = vpack.c.b16 %v499, %v493
  %v518 = vpack.c.b16 %v500, %v494
  %v519 = vpack.c.b16 %v501, %v495
  %v520 = vpack.c.b16 %v502, %v496
  %v521 = vpack.c.b16 %v503, %v497
  %v522 = vpack.c.b16 %v504, %v498
  %v523 = vpack.c.b16 %v505, %v505
  %v524 = vpack.c.b16 %v506, %v506
  %v525 = vpack.c.b16 %v507, %v507
  %v526 = vpack.c.b16 %v508, %v508
  %v527 = vpack.c.b16 %v509, %v509
  %v528 = vpack.c.b16 %v510, %v510
  %vm541 = vcmask 293888
  %v543 = vsel %vm541, %v450, 0
  %v546 = vsel %vm62, %v523, 0
  %v549 = vsel %vm62, %v524, 0
  %v552 = vsel %vm62, %v525, 0
  %v555 = vsel %vm62, %v526, 0
  %v558 = vsel %vm62, %v527, 0
  %v561 = vsel %vm62, %v528, 0
  %563 = vmatprep.subr.bf16.mxu0 0
  %564 = vmatpush1.bf16.msra.mxu0 0
  %565 = vmatprep.subr.bf16.mxu0 0
  %566 = vmatpush1.bf16.msra.mxu0 0
  %567 = vmatprep.subr.bf16.mxu0 0
  %568 = vmatpush1.bf16.msra.mxu0 0
  %569 = vmatprep.subr.bf16.mxu0 0
  %570 = vmatpush1.bf16.msra.mxu0 0
  %571 = vmatprep.subr.bf16.mxu0 0
  %572 = vmatpush1.bf16.msra.mxu0 0
  %573 = vmatprep.subr.bf16.mxu0 %v549
  %574 = vmatpush1.bf16.msra.mxu0 %v546
  %575 = vmatprep.subr.bf16.mxu0 %v518
  %576 = vmatpush1.bf16.msra.mxu0 %v517
  %577 = vmatprep.subr.bf16.mxu0 %v512
  %578 = vmatpush1.bf16.msra.mxu0 %v511
  %579 = vmatprep.subr.bf16.mxu0 0
  %580 = vmatpush2.bf16.msra.mxu0 0
  %581 = vmatprep.subr.bf16.mxu0 0
  %582 = vmatpush2.bf16.msra.mxu0 0
  %583 = vmatprep.subr.bf16.mxu0 0
  %584 = vmatpush2.bf16.msra.mxu0 0
  %585 = vmatprep.subr.bf16.mxu0 0
  %586 = vmatpush2.bf16.msra.mxu0 0
  %587 = vmatprep.subr.bf16.mxu0 0
  %588 = vmatpush2.bf16.msra.mxu0 0
  %589 = vmatprep.subr.bf16.mxu0 0
  %590 = vmatpush2.bf16.msra.mxu0 0
  %591 = vmatprep.subr.bf16.mxu0 0
  %592 = vmatpush2.bf16.msra.mxu0 0
  %593 = vmatprep.subr.bf16.mxu0 0
  %594 = vmatpush2.bf16.msra.mxu0 0
  %595 = vmatprep.mubr.bf16.mxu0 0
  %596 = vmatmul.mubr.bf16.gmra.mxu0 %v543
  %v597 = vpop.f32.mrf.mxu0
  %v598 = vadd.f32 0.0, %v597
  %v599 = vpop.f32.mrf.mxu0
  %v600 = vadd.f32 0.0, %v599
  %v601 = vpop.f32.mrf.mxu0
  %v602 = vpop.f32.mrf.mxu0
  %603 = vdwg.mxu0
  %604 = vmatprep.subr.bf16.mxu0 0
  %605 = vmatpush1.bf16.msra.mxu0 0
  %606 = vmatprep.subr.bf16.mxu0 0
  %607 = vmatpush1.bf16.msra.mxu0 0
  %608 = vmatprep.subr.bf16.mxu0 0
  %609 = vmatpush1.bf16.msra.mxu0 0
  %610 = vmatprep.subr.bf16.mxu0 0
  %611 = vmatpush1.bf16.msra.mxu0 0
  %612 = vmatprep.subr.bf16.mxu0 0
  %613 = vmatpush1.bf16.msra.mxu0 0
  %614 = vmatprep.subr.bf16.mxu0 %v555
  %615 = vmatpush1.bf16.msra.mxu0 %v552
  %616 = vmatprep.subr.bf16.mxu0 %v520
  %617 = vmatpush1.bf16.msra.mxu0 %v519
  %618 = vmatprep.subr.bf16.mxu0 %v514
  %619 = vmatpush1.bf16.msra.mxu0 %v513
  %620 = vmatprep.subr.bf16.mxu0 0
  %621 = vmatpush2.bf16.msra.mxu0 0
  %622 = vmatprep.subr.bf16.mxu0 0
  %623 = vmatpush2.bf16.msra.mxu0 0
  %624 = vmatprep.subr.bf16.mxu0 0
  %625 = vmatpush2.bf16.msra.mxu0 0
  %626 = vmatprep.subr.bf16.mxu0 0
  %627 = vmatpush2.bf16.msra.mxu0 0
  %628 = vmatprep.subr.bf16.mxu0 0
  %629 = vmatpush2.bf16.msra.mxu0 0
  %630 = vmatprep.subr.bf16.mxu0 0
  %631 = vmatpush2.bf16.msra.mxu0 0
  %632 = vmatprep.subr.bf16.mxu0 0
  %633 = vmatpush2.bf16.msra.mxu0 0
  %634 = vmatprep.subr.bf16.mxu0 0
  %635 = vmatpush2.bf16.msra.mxu0 0
  %636 = vmatprep.mubr.bf16.mxu0 0
  %637 = vmatmul.mubr.bf16.gmra.mxu0 %v543
  %v638 = vpop.f32.mrf.mxu0
  %v639 = vadd.f32 0.0, %v638
  %v640 = vpop.f32.mrf.mxu0
  %v641 = vadd.f32 0.0, %v640
  %v642 = vpop.f32.mrf.mxu0
  %v643 = vpop.f32.mrf.mxu0
  %644 = vdwg.mxu0
  %645 = vmatprep.subr.bf16.mxu0 0
  %646 = vmatpush1.bf16.msra.mxu0 0
  %647 = vmatprep.subr.bf16.mxu0 0
  %648 = vmatpush1.bf16.msra.mxu0 0
  %649 = vmatprep.subr.bf16.mxu0 0
  %650 = vmatpush1.bf16.msra.mxu0 0
  %651 = vmatprep.subr.bf16.mxu0 0
  %652 = vmatpush1.bf16.msra.mxu0 0
  %653 = vmatprep.subr.bf16.mxu0 0
  %654 = vmatpush1.bf16.msra.mxu0 0
  %655 = vmatprep.subr.bf16.mxu0 %v561
  %656 = vmatpush1.bf16.msra.mxu0 %v558
  %657 = vmatprep.subr.bf16.mxu0 %v522
  %658 = vmatpush1.bf16.msra.mxu0 %v521
  %659 = vmatprep.subr.bf16.mxu0 %v516
  %660 = vmatpush1.bf16.msra.mxu0 %v515
  %661 = vmatprep.subr.bf16.mxu0 0
  %662 = vmatpush2.bf16.msra.mxu0 0
  %663 = vmatprep.subr.bf16.mxu0 0
  %664 = vmatpush2.bf16.msra.mxu0 0
  %665 = vmatprep.subr.bf16.mxu0 0
  %666 = vmatpush2.bf16.msra.mxu0 0
  %667 = vmatprep.subr.bf16.mxu0 0
  %668 = vmatpush2.bf16.msra.mxu0 0
  %669 = vmatprep.subr.bf16.mxu0 0
  %670 = vmatpush2.bf16.msra.mxu0 0
  %671 = vmatprep.subr.bf16.mxu0 0
  %672 = vmatpush2.bf16.msra.mxu0 0
  %673 = vmatprep.subr.bf16.mxu0 0
  %674 = vmatpush2.bf16.msra.mxu0 0
  %675 = vmatprep.subr.bf16.mxu0 0
  %676 = vmatpush2.bf16.msra.mxu0 0
  %677 = vmatprep.mubr.bf16.mxu0 0
  %678 = vmatmul.mubr.bf16.gmra.mxu0 %v543
  %v679 = vpop.f32.mrf.mxu0
  %v680 = vadd.f32 0.0, %v679
  %v681 = vpop.f32.mrf.mxu0
  %v682 = vadd.f32 0.0, %v681
  %v683 = vpop.f32.mrf.mxu0
  %v684 = vpop.f32.mrf.mxu0
  %685 = vdwg.mxu0
  %v687 = vlaneseq
  %v688 = vshrl.u32 %v687, 7
  %v689 = vsub.s32 0, %v688
  %v690 = vrot.slane %v30, %v689
  %v691 = vlaneseq
  %v692 = vshrl.u32 %v691, 7
  %v693 = vsub.s32 1, %v692
  %v694 = vrot.slane %v30, %v693
  %v695 = vlaneseq
  %v696 = vshrl.u32 %v695, 7
  %v697 = vsub.s32 2, %v696
  %v698 = vrot.slane %v30, %v697
  %v699 = vlaneseq
  %v700 = vshrl.u32 %v699, 7
  %v701 = vsub.s32 3, %v700
  %v702 = vrot.slane %v30, %v701
  %v703 = vlaneseq
  %v704 = vshrl.u32 %v703, 7
  %v705 = vsub.s32 4, %v704
  %v706 = vrot.slane %v30, %v705
  %v707 = vlaneseq
  %v708 = vshrl.u32 %v707, 7
  %v709 = vsub.s32 5, %v708
  %v710 = vrot.slane %v30, %v709
  %v717 = vmul.f32 %v598, %v690
  %v718 = vmul.f32 %v600, %v694
  %v719 = vmul.f32 %v639, %v698
  %v720 = vmul.f32 %v641, %v702
  %v721 = vmul.f32 %v680, %v706
  %v722 = vmul.f32 %v682, %v710
  %v723 = vadd.f32 %v717, %v718
  %v724 = vadd.f32 %v723, %v719
  %v725 = vadd.f32 %v724, %v720
  %v726 = vadd.f32 %v725, %v721
  %vm727 = vcmask 64512
  %v728 = vsel %vm727, %v722, 0.0
  %v729 = vadd.f32 %v726, %v728
  %730 = vadd.xlane.f32.xlu0 %v729
  %v731 = vpop.xlane.xlu0 %730
  %v732 = vmul.f32 %v717, %v598
  %v733 = vmul.f32 %v718, %v600
  %v734 = vmul.f32 %v719, %v639
  %v735 = vmul.f32 %v720, %v641
  %v736 = vmul.f32 %v721, %v680
  %v737 = vmul.f32 %v722, %v682
  %v738 = vadd.f32 %v732, %v733
  %v739 = vadd.f32 %v738, %v734
  %v740 = vadd.f32 %v739, %v735
  %v741 = vadd.f32 %v740, %v736
  %v742 = vsel %vm727, %v737, 0.0
  %v743 = vadd.f32 %v741, %v742
  %744 = vadd.xlane.f32.xlu0 %v743
  %v745 = vpop.xlane.xlu0 %744
  %v746 = vmul.f32 %v731, 0.001953125
  %v747 = vmul.f32 %v745, 0.001953125
  %v748 = vmul.f32 %v746, %v746
  %v749 = vsub.f32 %v747, %v748
  %v750 = vmax.f32 %v749, 0.0
  %v751 = vld [vmem:[%s3] sm:$0xff]
  %v752 = vadd.f32 %v750, 1e-05
  %v753 = vrsqrt.pop %v752
  %v754 = vmul.f32 %v751, %v753
  %v755 = vld [vmem:[%s4] sm:$0xff]
  %v756 = vmul.f32 %v746, %v754
  %v757 = vsub.f32 %v755, %v756
  %759 = vset.pattern.permute.xlu0 0
  %760 = vperm.xlu0 %759, %v754
  %v761 = vpop.permute.xlu0 %760
  %v763 = vmul.f32 %v598, %v761
  %v764 = vmul.f32 %v600, %v761
  %v765 = vmul.f32 %v639, %v761
  %v766 = vmul.f32 %v641, %v761
  %v767 = vmul.f32 %v680, %v761
  %v768 = vmul.f32 %v682, %v761
  %770 = vset.pattern.permute.xlu0 0
  %771 = vperm.xlu0 %770, %v757
  %v772 = vpop.permute.xlu0 %771
  %v774 = vadd.f32 %v763, %v772
  %v775 = vadd.f32 %v764, %v772
  %v776 = vadd.f32 %v765, %v772
  %v777 = vadd.f32 %v766, %v772
  %v778 = vadd.f32 %v767, %v772
  %v779 = vadd.f32 %v768, %v772
  %v780 = vmax.f32 %v774, 0.0
  %v781 = vmax.f32 %v775, 0.0
  %v782 = vmax.f32 %v776, 0.0
  %v783 = vmax.f32 %v777, 0.0
  %v784 = vmax.f32 %v778, 0.0
  %v785 = vmax.f32 %v779, 0.0
  %v786 = vmul.f32 %v780, %v690
  %v787 = vmul.f32 %v781, %v694
  %v788 = vmul.f32 %v782, %v698
  %v789 = vmul.f32 %v783, %v702
  %v790 = vmul.f32 %v784, %v706
  %v791 = vmul.f32 %v785, %v710
  %vm792 = vcmask 150528
  %793 = vst.msk [vmem:[#allocation3] sm:$0xf] %vm792, 0
  %vm794 = vcmask 371928
  %795 = vst.msk [vmem:[#allocation3 + $0x14] sm:$0xf] %vm794, 0
  %v796 = vpack.c.bf16 %v786, %v786
  %v797 = vpack.c.bf16 %v787, %v787
  %v798 = vpack.c.bf16 %v788, %v788
  %v799 = vpack.c.bf16 %v789, %v789
  %v800 = vpack.c.bf16 %v790, %v790
  %v801 = vpack.c.bf16 %v791, %v791
  %v808 = vunpack.c.l.b16 %v796
  %v809 = vunpack.c.l.b16 %v797
  %v810 = vunpack.c.l.b16 %v798
  %v811 = vunpack.c.l.b16 %v799
  %v812 = vunpack.c.l.b16 %v800
  %v813 = vunpack.c.l.b16 %v801
  %v814 = vpack.c.b16 %v809, %v808
  %v815 = vpack.c.b16 %v811, %v810
  %v816 = vpack.c.b16 %v813, %v812
  %817 = vrot.lane.b32.xlu0 %v814, 19
  %v818 = vpop.permute.xlu0 %817
  %819 = vrot.lane.b32.xlu0 %v815, 19
  %v820 = vpop.permute.xlu0 %819
  %821 = vrot.lane.b32.xlu0 %v816, 19
  %v822 = vpop.permute.xlu0 %821
  %v823 = vrot.slane %v818, 4
  %v824 = vrot.slane %v820, 4
  %v825 = vrot.slane %v822, 4
  %vm826 = vcmask 154624
  %v827 = vsel %vm826, %v823, %v818
  %v828 = vsel %vm102, %v823, %v824
  %v829 = vsel %vm826, %v828, %v820
  %v830 = vsel %vm102, %v824, %v825
  %v831 = vsel %vm826, %v830, %v822
  %vm835 = vcmask 1043608
  %vm836 = vcmask 1047556
  %vm837 = vmor %vm836, %vm835
  %838 = vst.msk [vmem:[#allocation3] sm:$0xff] %vm837, %v827
  %839 = vst [vmem:[#allocation3 + $0x8] sm:$0xff] %v829
  %vm840 = vcmask 1043456
  %vm841 = vcmask 220164
  %vm842 = vmor %vm841, %vm840
  %843 = vst.msk [vmem:[#allocation3 + $0x10] sm:$0xff] %vm842, %v831
  %v844 = vld [vmem:[#allocation3] sm:$0xff]
  %v845 = vld [vmem:[#allocation3 + $0x8] sm:$0xff]
  %v846 = vld [vmem:[#allocation3 + $0x10] sm:$0xff]
  %847 = vst [vmem:[#allocation4] sm:$0xff] %v844
  %848 = vst [vmem:[#allocation4 + $0x8] sm:$0xff] %v845
  %vm849 = vcmask 64516
  %vm850 = vmor %vm849, %vm840
  %851 = vst.msk [vmem:[#allocation4 + $0x10] sm:$0xff] %vm850, %v846
  %v852 = vld [vmem:[#allocation3] sm:$0xff]
  %v853 = vld [vmem:[#allocation3 + $0x8] sm:$0xff]
  %v854 = vld [vmem:[#allocation3 + $0x10] sm:$0xff]
  %858 = vrot.lane.b32.xlu0 %v852, 127
  %v859 = vpop.permute.xlu0 %858
  %860 = vrot.lane.b32.xlu0 %v853, 127
  %v861 = vpop.permute.xlu0 %860
  %862 = vrot.lane.b32.xlu0 %v854, 127
  %v863 = vpop.permute.xlu0 %862
  %v864 = vrot.slane %v859, 4
  %v865 = vrot.slane %v861, 4
  %v866 = vrot.slane %v863, 4
  %v867 = vsel %vm102, %v864, %v865
  %v868 = vsel %vm104, %v859, %v867
  %v869 = vsel %vm102, %v865, %v866
  %v870 = vsel %vm104, %v861, %v869
  %v871 = vsel %vm104, %v863, %v866
  %875 = vst [vmem:[#allocation4 + $0x18] sm:$0xff] %v868
  %876 = vst [vmem:[#allocation4 + $0x20] sm:$0xff] %v870
  %877 = vst.msk [vmem:[#allocation4 + $0x28] sm:$0xff] %vm850, %v871
  %v878 = vld [vmem:[#allocation3] sm:$0xff]
  %v879 = vld [vmem:[#allocation3 + $0x8] sm:$0xff]
  %v880 = vld [vmem:[#allocation3 + $0x10] sm:$0xff]
  %884 = vrot.lane.b32.xlu0 %v878, 126
  %v885 = vpop.permute.xlu0 %884
  %886 = vrot.lane.b32.xlu0 %v879, 126
  %v887 = vpop.permute.xlu0 %886
  %888 = vrot.lane.b32.xlu0 %v880, 126
  %v889 = vpop.permute.xlu0 %888
  %v890 = vrot.slane %v885, 4
  %v891 = vrot.slane %v887, 4
  %v892 = vrot.slane %v889, 4
  %v893 = vsel %vm102, %v890, %v891
  %v894 = vsel %vm154, %v885, %v893
  %v895 = vsel %vm102, %v891, %v892
  %v896 = vsel %vm154, %v887, %v895
  %v897 = vsel %vm154, %v889, %v892
  %901 = vst [vmem:[#allocation4 + $0x30] sm:$0xff] %v894
  %902 = vst [vmem:[#allocation4 + $0x38] sm:$0xff] %v896
  %903 = vst.msk [vmem:[#allocation4 + $0x40] sm:$0xff] %vm850, %v897
  %v904 = vld [vmem:[#allocation3] sm:$0xff]
  %v905 = vld [vmem:[#allocation3 + $0x8] sm:$0xff]
  %v906 = vld [vmem:[#allocation3 + $0x10] sm:$0xff]
  %910 = vrot.lane.b32.xlu0 %v904, 110
  %v911 = vpop.permute.xlu0 %910
  %912 = vrot.lane.b32.xlu0 %v905, 110
  %v913 = vpop.permute.xlu0 %912
  %914 = vrot.lane.b32.xlu0 %v906, 110
  %v915 = vpop.permute.xlu0 %914
  %v916 = vrot.slane %v911, 4
  %v917 = vrot.slane %v913, 4
  %v918 = vrot.slane %v915, 4
  %v919 = vsel %vm102, %v916, %v917
  %v920 = vsel %vm202, %v911, %v919
  %v921 = vsel %vm102, %v917, %v918
  %v922 = vsel %vm202, %v913, %v921
  %v923 = vsel %vm202, %v915, %v918
  %927 = vst [vmem:[#allocation4 + $0x48] sm:$0xff] %v920
  %928 = vst [vmem:[#allocation4 + $0x50] sm:$0xff] %v922
  %929 = vst.msk [vmem:[#allocation4 + $0x58] sm:$0xff] %vm850, %v923
  %v930 = vld [vmem:[#allocation3] sm:$0xff]
  %v931 = vld [vmem:[#allocation3 + $0x8] sm:$0xff]
  %v932 = vld [vmem:[#allocation3 + $0x10] sm:$0xff]
  %936 = vrot.lane.b32.xlu0 %v930, 109
  %v937 = vpop.permute.xlu0 %936
  %938 = vrot.lane.b32.xlu0 %v931, 109
  %v939 = vpop.permute.xlu0 %938
  %940 = vrot.lane.b32.xlu0 %v932, 109
  %v941 = vpop.permute.xlu0 %940
  %v942 = vrot.slane %v937, 4
  %v943 = vrot.slane %v939, 4
  %v944 = vrot.slane %v941, 4
  %v945 = vsel %vm102, %v942, %v943
  %v946 = vsel %vm249, %v937, %v945
  %v947 = vsel %vm102, %v943, %v944
  %v948 = vsel %vm249, %v939, %v947
  %v949 = vsel %vm249, %v941, %v944
  %953 = vst [vmem:[#allocation4 + $0x60] sm:$0xff] %v946
  %954 = vst [vmem:[#allocation4 + $0x68] sm:$0xff] %v948
  %955 = vst.msk [vmem:[#allocation4 + $0x70] sm:$0xff] %vm850, %v949
  %v956 = vld [vmem:[#allocation3] sm:$0xff]
  %v957 = vld [vmem:[#allocation3 + $0x8] sm:$0xff]
  %v958 = vld [vmem:[#allocation3 + $0x10] sm:$0xff]
  %962 = vrot.lane.b32.xlu0 %v956, 108
  %v963 = vpop.permute.xlu0 %962
  %964 = vrot.lane.b32.xlu0 %v957, 108
  %v965 = vpop.permute.xlu0 %964
  %966 = vrot.lane.b32.xlu0 %v958, 108
  %v967 = vpop.permute.xlu0 %966
  %v968 = vrot.slane %v963, 4
  %v969 = vrot.slane %v965, 4
  %v970 = vrot.slane %v967, 4
  %v971 = vsel %vm102, %v968, %v969
  %v972 = vsel %vm297, %v963, %v971
  %v973 = vsel %vm102, %v969, %v970
  %v974 = vsel %vm297, %v965, %v973
  %v975 = vsel %vm297, %v967, %v970
  %979 = vst [vmem:[#allocation4 + $0x78] sm:$0xff] %v972
  %980 = vst [vmem:[#allocation4 + $0x80] sm:$0xff] %v974
  %981 = vst.msk [vmem:[#allocation4 + $0x88] sm:$0xff] %vm850, %v975
  %v982 = vld [vmem:[#allocation3] sm:$0xff]
  %v983 = vld [vmem:[#allocation3 + $0x8] sm:$0xff]
  %v984 = vld [vmem:[#allocation3 + $0x10] sm:$0xff]
  %988 = vrot.lane.b32.xlu0 %v982, 92
  %v989 = vpop.permute.xlu0 %988
  %990 = vrot.lane.b32.xlu0 %v983, 92
  %v991 = vpop.permute.xlu0 %990
  %992 = vrot.lane.b32.xlu0 %v984, 92
  %v993 = vpop.permute.xlu0 %992
  %v994 = vrot.slane %v989, 4
  %v995 = vrot.slane %v991, 4
  %v996 = vrot.slane %v993, 4
  %v997 = vsel %vm102, %v994, %v995
  %v998 = vsel %vm344, %v989, %v997
  %v999 = vsel %vm102, %v995, %v996
  %v1000 = vsel %vm344, %v991, %v999
  %v1001 = vsel %vm344, %v993, %v996
  %1005 = vst [vmem:[#allocation4 + $0x90] sm:$0xff] %v998
  %1006 = vst [vmem:[#allocation4 + $0x98] sm:$0xff] %v1000
  %1007 = vst.msk [vmem:[#allocation4 + $0xa0] sm:$0xff] %vm850, %v1001
  %v1008 = vld [vmem:[#allocation3] sm:$0xff]
  %v1009 = vld [vmem:[#allocation3 + $0x8] sm:$0xff]
  %v1010 = vld [vmem:[#allocation3 + $0x10] sm:$0xff]
  %1014 = vrot.lane.b32.xlu0 %v1008, 91
  %v1015 = vpop.permute.xlu0 %1014
  %1016 = vrot.lane.b32.xlu0 %v1009, 91
  %v1017 = vpop.permute.xlu0 %1016
  %1018 = vrot.lane.b32.xlu0 %v1010, 91
  %v1019 = vpop.permute.xlu0 %1018
  %v1020 = vrot.slane %v1015, 4
  %v1021 = vrot.slane %v1017, 4
  %v1022 = vrot.slane %v1019, 4
  %v1023 = vsel %vm102, %v1020, %v1021
  %v1024 = vsel %vm392, %v1015, %v1023
  %v1025 = vsel %vm102, %v1021, %v1022
  %v1026 = vsel %vm392, %v1017, %v1025
  %v1027 = vsel %vm392, %v1019, %v1022
  %1031 = vst [vmem:[#allocation4 + $0xa8] sm:$0xff] %v1024
  %1032 = vst [vmem:[#allocation4 + $0xb0] sm:$0xff] %v1026
  %1033 = vst.msk [vmem:[#allocation4 + $0xb8] sm:$0xff] %vm850, %v1027
  %v1034 = vld [vmem:[#allocation3] sm:$0xff]
  %v1035 = vld [vmem:[#allocation3 + $0x8] sm:$0xff]
  %v1036 = vld [vmem:[#allocation3 + $0x10] sm:$0xff]
  %1040 = vrot.lane.b32.xlu0 %v1034, 90
  %v1041 = vpop.permute.xlu0 %1040
  %1042 = vrot.lane.b32.xlu0 %v1035, 90
  %v1043 = vpop.permute.xlu0 %1042
  %1044 = vrot.lane.b32.xlu0 %v1036, 90
  %v1045 = vpop.permute.xlu0 %1044
  %v1046 = vrot.slane %v1041, 4
  %v1047 = vrot.slane %v1043, 4
  %v1048 = vrot.slane %v1045, 4
  %v1049 = vsel %vm102, %v1046, %v1047
  %v1050 = vsel %vm439, %v1041, %v1049
  %v1051 = vsel %vm102, %v1047, %v1048
  %v1052 = vsel %vm439, %v1043, %v1051
  %v1053 = vsel %vm439, %v1045, %v1048
  %1057 = vst [vmem:[#allocation4 + $0xc0] sm:$0xff] %v1050
  %1058 = vst [vmem:[#allocation4 + $0xc8] sm:$0xff] %v1052
  %1059 = vst.msk [vmem:[#allocation4 + $0xd0] sm:$0xff] %vm850, %v1053
  %v1060 = vld [vmem:[%s5] sm:$0xf]
  %v1061 = vld [vmem:[#allocation4] sm:$0xff]
  %v1062 = vld [vmem:[#allocation4 + $0x8] sm:$0xff]
  %v1063 = vld [vmem:[#allocation4 + $0x10] sm:$0xff]
  %v1064 = vld [vmem:[#allocation4 + $0x18] sm:$0xff]
  %v1065 = vld [vmem:[#allocation4 + $0x20] sm:$0xff]
  %v1066 = vld [vmem:[#allocation4 + $0x28] sm:$0xff]
  %v1067 = vld [vmem:[#allocation4 + $0x30] sm:$0xff]
  %v1068 = vld [vmem:[#allocation4 + $0x38] sm:$0xff]
  %v1069 = vld [vmem:[#allocation4 + $0x40] sm:$0xff]
  %v1070 = vld [vmem:[#allocation4 + $0x48] sm:$0xff]
  %v1071 = vld [vmem:[#allocation4 + $0x50] sm:$0xff]
  %v1072 = vld [vmem:[#allocation4 + $0x58] sm:$0xff]
  %v1073 = vld [vmem:[#allocation4 + $0x60] sm:$0xff]
  %v1074 = vld [vmem:[#allocation4 + $0x68] sm:$0xff]
  %v1075 = vld [vmem:[#allocation4 + $0x70] sm:$0xff]
  %v1076 = vld [vmem:[#allocation4 + $0x78] sm:$0xff]
  %v1077 = vld [vmem:[#allocation4 + $0x80] sm:$0xff]
  %v1078 = vld [vmem:[#allocation4 + $0x88] sm:$0xff]
  %v1079 = vld [vmem:[#allocation4 + $0x90] sm:$0xff]
  %v1080 = vld [vmem:[#allocation4 + $0x98] sm:$0xff]
  %v1081 = vld [vmem:[#allocation4 + $0xa0] sm:$0xff]
  %v1082 = vld [vmem:[#allocation4 + $0xa8] sm:$0xff]
  %v1083 = vld [vmem:[#allocation4 + $0xb0] sm:$0xff]
  %v1084 = vld [vmem:[#allocation4 + $0xb8] sm:$0xff]
  %v1085 = vld [vmem:[#allocation4 + $0xc0] sm:$0xff]
  %v1086 = vld [vmem:[#allocation4 + $0xc8] sm:$0xff]
  %v1087 = vld [vmem:[#allocation4 + $0xd0] sm:$0xff]
  %v1115 = vunpack.c.l.b16 %v1061
  %v1116 = vunpack.c.h.b16 %v1061
  %v1117 = vunpack.c.l.b16 %v1062
  %v1118 = vunpack.c.h.b16 %v1062
  %v1119 = vunpack.c.l.b16 %v1063
  %v1120 = vunpack.c.h.b16 %v1063
  %v1121 = vunpack.c.l.b16 %v1064
  %v1122 = vunpack.c.h.b16 %v1064
  %v1123 = vunpack.c.l.b16 %v1065
  %v1124 = vunpack.c.h.b16 %v1065
  %v1125 = vunpack.c.l.b16 %v1066
  %v1126 = vunpack.c.h.b16 %v1066
  %v1127 = vunpack.c.l.b16 %v1067
  %v1128 = vunpack.c.h.b16 %v1067
  %v1129 = vunpack.c.l.b16 %v1068
  %v1130 = vunpack.c.h.b16 %v1068
  %v1131 = vunpack.c.l.b16 %v1069
  %v1132 = vunpack.c.h.b16 %v1069
  %v1133 = vunpack.c.l.b16 %v1070
  %v1134 = vunpack.c.h.b16 %v1070
  %v1135 = vunpack.c.l.b16 %v1071
  %v1136 = vunpack.c.h.b16 %v1071
  %v1137 = vunpack.c.l.b16 %v1072
  %v1138 = vunpack.c.h.b16 %v1072
  %v1139 = vunpack.c.l.b16 %v1073
  %v1140 = vunpack.c.h.b16 %v1073
  %v1141 = vunpack.c.l.b16 %v1074
  %v1142 = vunpack.c.h.b16 %v1074
  %v1143 = vunpack.c.l.b16 %v1075
  %v1144 = vunpack.c.h.b16 %v1075
  %v1145 = vunpack.c.l.b16 %v1076
  %v1146 = vunpack.c.h.b16 %v1076
  %v1147 = vunpack.c.l.b16 %v1077
  %v1148 = vunpack.c.h.b16 %v1077
  %v1149 = vunpack.c.l.b16 %v1078
  %v1150 = vunpack.c.h.b16 %v1078
  %v1151 = vunpack.c.l.b16 %v1079
  %v1152 = vunpack.c.h.b16 %v1079
  %v1153 = vunpack.c.l.b16 %v1080
  %v1154 = vunpack.c.h.b16 %v1080
  %v1155 = vunpack.c.l.b16 %v1081
  %v1156 = vunpack.c.h.b16 %v1081
  %v1157 = vunpack.c.l.b16 %v1082
  %v1158 = vunpack.c.h.b16 %v1082
  %v1159 = vunpack.c.l.b16 %v1083
  %v1160 = vunpack.c.h.b16 %v1083
  %v1161 = vunpack.c.l.b16 %v1084
  %v1162 = vunpack.c.h.b16 %v1084
  %v1163 = vunpack.c.l.b16 %v1085
  %v1164 = vunpack.c.h.b16 %v1085
  %v1165 = vunpack.c.l.b16 %v1086
  %v1166 = vunpack.c.h.b16 %v1086
  %v1167 = vunpack.c.l.b16 %v1087
  %v1168 = vunpack.c.h.b16 %v1087
  %v1169 = vpack.c.b16 %v1121, %v1115
  %v1170 = vpack.c.b16 %v1122, %v1116
  %v1171 = vpack.c.b16 %v1123, %v1117
  %v1172 = vpack.c.b16 %v1124, %v1118
  %v1173 = vpack.c.b16 %v1125, %v1119
  %v1174 = vpack.c.b16 %v1126, %v1120
  %v1175 = vpack.c.b16 %v1133, %v1127
  %v1176 = vpack.c.b16 %v1134, %v1128
  %v1177 = vpack.c.b16 %v1135, %v1129
  %v1178 = vpack.c.b16 %v1136, %v1130
  %v1179 = vpack.c.b16 %v1137, %v1131
  %v1180 = vpack.c.b16 %v1138, %v1132
  %v1181 = vpack.c.b16 %v1145, %v1139
  %v1182 = vpack.c.b16 %v1146, %v1140
  %v1183 = vpack.c.b16 %v1147, %v1141
  %v1184 = vpack.c.b16 %v1148, %v1142
  %v1185 = vpack.c.b16 %v1149, %v1143
  %v1186 = vpack.c.b16 %v1150, %v1144
  %v1187 = vpack.c.b16 %v1157, %v1151
  %v1188 = vpack.c.b16 %v1158, %v1152
  %v1189 = vpack.c.b16 %v1159, %v1153
  %v1190 = vpack.c.b16 %v1160, %v1154
  %v1191 = vpack.c.b16 %v1161, %v1155
  %v1192 = vpack.c.b16 %v1162, %v1156
  %v1193 = vpack.c.b16 %v1163, %v1163
  %v1194 = vpack.c.b16 %v1164, %v1164
  %v1195 = vpack.c.b16 %v1165, %v1165
  %v1196 = vpack.c.b16 %v1166, %v1166
  %v1197 = vpack.c.b16 %v1167, %v1167
  %v1198 = vpack.c.b16 %v1168, %v1168
  %vm1223 = vcmask 588800
  %v1225 = vsel %vm1223, %v1060, 0
  %v1228 = vsel %vm840, %v1193, 0
  %v1231 = vsel %vm840, %v1194, 0
  %v1234 = vsel %vm840, %v1195, 0
  %v1237 = vsel %vm840, %v1196, 0
  %v1240 = vsel %vm840, %v1197, 0
  %v1243 = vsel %vm840, %v1198, 0
  %1245 = vmatprep.subr.bf16.mxu0 0
  %1246 = vmatpush1.bf16.msra.mxu0 0
  %1247 = vmatprep.subr.bf16.mxu0 0
  %1248 = vmatpush1.bf16.msra.mxu0 0
  %1249 = vmatprep.subr.bf16.mxu0 0
  %1250 = vmatpush1.bf16.msra.mxu0 0
  %1251 = vmatprep.subr.bf16.mxu0 %v1231
  %1252 = vmatpush1.bf16.msra.mxu0 %v1228
  %1253 = vmatprep.subr.bf16.mxu0 %v1188
  %1254 = vmatpush1.bf16.msra.mxu0 %v1187
  %1255 = vmatprep.subr.bf16.mxu0 %v1182
  %1256 = vmatpush1.bf16.msra.mxu0 %v1181
  %1257 = vmatprep.subr.bf16.mxu0 %v1176
  %1258 = vmatpush1.bf16.msra.mxu0 %v1175
  %1259 = vmatprep.subr.bf16.mxu0 %v1170
  %1260 = vmatpush1.bf16.msra.mxu0 %v1169
  %1261 = vmatprep.subr.bf16.mxu0 0
  %1262 = vmatpush2.bf16.msra.mxu0 0
  %1263 = vmatprep.subr.bf16.mxu0 0
  %1264 = vmatpush2.bf16.msra.mxu0 0
  %1265 = vmatprep.subr.bf16.mxu0 0
  %1266 = vmatpush2.bf16.msra.mxu0 0
  %1267 = vmatprep.subr.bf16.mxu0 0
  %1268 = vmatpush2.bf16.msra.mxu0 0
  %1269 = vmatprep.subr.bf16.mxu0 0
  %1270 = vmatpush2.bf16.msra.mxu0 0
  %1271 = vmatprep.subr.bf16.mxu0 0
  %1272 = vmatpush2.bf16.msra.mxu0 0
  %1273 = vmatprep.subr.bf16.mxu0 0
  %1274 = vmatpush2.bf16.msra.mxu0 0
  %1275 = vmatprep.subr.bf16.mxu0 0
  %1276 = vmatpush2.bf16.msra.mxu0 0
  %1277 = vmatprep.mubr.bf16.mxu0 0
  %1278 = vmatmul.mubr.bf16.gmra.mxu0 %v1225
  %v1279 = vpop.f32.mrf.mxu0
  %v1280 = vadd.f32 0.0, %v1279
  %v1281 = vpop.f32.mrf.mxu0
  %v1282 = vadd.f32 0.0, %v1281
  %v1283 = vpop.f32.mrf.mxu0
  %v1284 = vpop.f32.mrf.mxu0
  %1285 = vdwg.mxu0
  %1286 = vmatprep.subr.bf16.mxu0 0
  %1287 = vmatpush1.bf16.msra.mxu0 0
  %1288 = vmatprep.subr.bf16.mxu0 0
  %1289 = vmatpush1.bf16.msra.mxu0 0
  %1290 = vmatprep.subr.bf16.mxu0 0
  %1291 = vmatpush1.bf16.msra.mxu0 0
  %1292 = vmatprep.subr.bf16.mxu0 %v1237
  %1293 = vmatpush1.bf16.msra.mxu0 %v1234
  %1294 = vmatprep.subr.bf16.mxu0 %v1190
  %1295 = vmatpush1.bf16.msra.mxu0 %v1189
  %1296 = vmatprep.subr.bf16.mxu0 %v1184
  %1297 = vmatpush1.bf16.msra.mxu0 %v1183
  %1298 = vmatprep.subr.bf16.mxu0 %v1178
  %1299 = vmatpush1.bf16.msra.mxu0 %v1177
  %1300 = vmatprep.subr.bf16.mxu0 %v1172
  %1301 = vmatpush1.bf16.msra.mxu0 %v1171
  %1302 = vmatprep.subr.bf16.mxu0 0
  %1303 = vmatpush2.bf16.msra.mxu0 0
  %1304 = vmatprep.subr.bf16.mxu0 0
  %1305 = vmatpush2.bf16.msra.mxu0 0
  %1306 = vmatprep.subr.bf16.mxu0 0
  %1307 = vmatpush2.bf16.msra.mxu0 0
  %1308 = vmatprep.subr.bf16.mxu0 0
  %1309 = vmatpush2.bf16.msra.mxu0 0
  %1310 = vmatprep.subr.bf16.mxu0 0
  %1311 = vmatpush2.bf16.msra.mxu0 0
  %1312 = vmatprep.subr.bf16.mxu0 0
  %1313 = vmatpush2.bf16.msra.mxu0 0
  %1314 = vmatprep.subr.bf16.mxu0 0
  %1315 = vmatpush2.bf16.msra.mxu0 0
  %1316 = vmatprep.subr.bf16.mxu0 0
  %1317 = vmatpush2.bf16.msra.mxu0 0
  %1318 = vmatprep.mubr.bf16.mxu0 0
  %1319 = vmatmul.mubr.bf16.gmra.mxu0 %v1225
  %v1320 = vpop.f32.mrf.mxu0
  %v1321 = vadd.f32 0.0, %v1320
  %v1322 = vpop.f32.mrf.mxu0
  %v1323 = vadd.f32 0.0, %v1322
  %v1324 = vpop.f32.mrf.mxu0
  %v1325 = vpop.f32.mrf.mxu0
  %1326 = vdwg.mxu0
  %1327 = vmatprep.subr.bf16.mxu0 0
  %1328 = vmatpush1.bf16.msra.mxu0 0
  %1329 = vmatprep.subr.bf16.mxu0 0
  %1330 = vmatpush1.bf16.msra.mxu0 0
  %1331 = vmatprep.subr.bf16.mxu0 0
  %1332 = vmatpush1.bf16.msra.mxu0 0
  %1333 = vmatprep.subr.bf16.mxu0 %v1243
  %1334 = vmatpush1.bf16.msra.mxu0 %v1240
  %1335 = vmatprep.subr.bf16.mxu0 %v1192
  %1336 = vmatpush1.bf16.msra.mxu0 %v1191
  %1337 = vmatprep.subr.bf16.mxu0 %v1186
  %1338 = vmatpush1.bf16.msra.mxu0 %v1185
  %1339 = vmatprep.subr.bf16.mxu0 %v1180
  %1340 = vmatpush1.bf16.msra.mxu0 %v1179
  %1341 = vmatprep.subr.bf16.mxu0 %v1174
  %1342 = vmatpush1.bf16.msra.mxu0 %v1173
  %1343 = vmatprep.subr.bf16.mxu0 0
  %1344 = vmatpush2.bf16.msra.mxu0 0
  %1345 = vmatprep.subr.bf16.mxu0 0
  %1346 = vmatpush2.bf16.msra.mxu0 0
  %1347 = vmatprep.subr.bf16.mxu0 0
  %1348 = vmatpush2.bf16.msra.mxu0 0
  %1349 = vmatprep.subr.bf16.mxu0 0
  %1350 = vmatpush2.bf16.msra.mxu0 0
  %1351 = vmatprep.subr.bf16.mxu0 0
  %1352 = vmatpush2.bf16.msra.mxu0 0
  %1353 = vmatprep.subr.bf16.mxu0 0
  %1354 = vmatpush2.bf16.msra.mxu0 0
  %1355 = vmatprep.subr.bf16.mxu0 0
  %1356 = vmatpush2.bf16.msra.mxu0 0
  %1357 = vmatprep.subr.bf16.mxu0 0
  %1358 = vmatpush2.bf16.msra.mxu0 0
  %1359 = vmatprep.mubr.bf16.mxu0 0
  %1360 = vmatmul.mubr.bf16.gmra.mxu0 %v1225
  %v1361 = vpop.f32.mrf.mxu0
  %v1362 = vadd.f32 0.0, %v1361
  %v1363 = vpop.f32.mrf.mxu0
  %v1364 = vadd.f32 0.0, %v1363
  %v1365 = vpop.f32.mrf.mxu0
  %v1366 = vpop.f32.mrf.mxu0
  %1367 = vdwg.mxu0
  %v1368 = vmul.f32 %v1280, %v690
  %v1369 = vmul.f32 %v1282, %v694
  %v1370 = vmul.f32 %v1321, %v698
  %v1371 = vmul.f32 %v1323, %v702
  %v1372 = vmul.f32 %v1362, %v706
  %v1373 = vmul.f32 %v1364, %v710
  %v1374 = vadd.f32 %v1368, %v1369
  %v1375 = vadd.f32 %v1374, %v1370
  %v1376 = vadd.f32 %v1375, %v1371
  %v1377 = vadd.f32 %v1376, %v1372
  %v1378 = vsel %vm727, %v1373, 0.0
  %v1379 = vadd.f32 %v1377, %v1378
  %1380 = vadd.xlane.f32.xlu0 %v1379
  %v1381 = vpop.xlane.xlu0 %1380
  %v1382 = vmul.f32 %v1368, %v1280
  %v1383 = vmul.f32 %v1369, %v1282
  %v1384 = vmul.f32 %v1370, %v1321
  %v1385 = vmul.f32 %v1371, %v1323
  %v1386 = vmul.f32 %v1372, %v1362
  %v1387 = vmul.f32 %v1373, %v1364
  %v1388 = vadd.f32 %v1382, %v1383
  %v1389 = vadd.f32 %v1388, %v1384
  %v1390 = vadd.f32 %v1389, %v1385
  %v1391 = vadd.f32 %v1390, %v1386
  %v1392 = vsel %vm727, %v1387, 0.0
  %v1393 = vadd.f32 %v1391, %v1392
  %1394 = vadd.xlane.f32.xlu0 %v1393
  %v1395 = vpop.xlane.xlu0 %1394
  %v1396 = vmul.f32 %v1381, 0.001953125
  %v1397 = vmul.f32 %v1395, 0.001953125
  %v1398 = vmul.f32 %v1396, %v1396
  %v1399 = vsub.f32 %v1397, %v1398
  %v1400 = vmax.f32 %v1399, 0.0
  %v1401 = vld [vmem:[%s6] sm:$0xff]
  %v1402 = vadd.f32 %v1400, 1e-05
  %v1403 = vrsqrt.pop %v1402
  %v1404 = vmul.f32 %v1401, %v1403
  %v1405 = vld [vmem:[%s7] sm:$0xff]
  %v1406 = vmul.f32 %v1396, %v1404
  %v1407 = vsub.f32 %v1405, %v1406
  %1409 = vset.pattern.permute.xlu0 0
  %1410 = vperm.xlu0 %1409, %v1404
  %v1411 = vpop.permute.xlu0 %1410
  %v1413 = vmul.f32 %v1280, %v1411
  %v1414 = vmul.f32 %v1282, %v1411
  %v1415 = vmul.f32 %v1321, %v1411
  %v1416 = vmul.f32 %v1323, %v1411
  %v1417 = vmul.f32 %v1362, %v1411
  %v1418 = vmul.f32 %v1364, %v1411
  %1420 = vset.pattern.permute.xlu0 0
  %1421 = vperm.xlu0 %1420, %v1407
  %v1422 = vpop.permute.xlu0 %1421
  %v1424 = vadd.f32 %v1413, %v1422
  %v1425 = vadd.f32 %v1414, %v1422
  %v1426 = vadd.f32 %v1415, %v1422
  %v1427 = vadd.f32 %v1416, %v1422
  %v1428 = vadd.f32 %v1417, %v1422
  %v1429 = vadd.f32 %v1418, %v1422
  %v1430 = vmax.f32 %v1424, 0.0
  %v1431 = vmax.f32 %v1425, 0.0
  %v1432 = vmax.f32 %v1426, 0.0
  %v1433 = vmax.f32 %v1427, 0.0
  %v1434 = vmax.f32 %v1428, 0.0
  %v1435 = vmax.f32 %v1429, 0.0
  %1436 = vst [vmem:[%s8] sm:$0xff] %v1430
  %1437 = vst [vmem:[%s8 + $0x8] sm:$0xff] %v1431
  %1438 = vst [vmem:[%s8 + $0x10] sm:$0xff] %v1432
  %1439 = vst [vmem:[%s8 + $0x18] sm:$0xff] %v1433
  %1440 = vst [vmem:[%s8 + $0x20] sm:$0xff] %v1434
  %1441 = vst.msk [vmem:[%s8 + $0x28] sm:$0xff] %vm727, %v1435
  // Predicated region
  $region34: #{unet_block_forward.1} parent=0 // pred_check
    _
  $region35: #{unet_block_forward.1} parent=0 // pred_check_branch
    %1443 = sbr.rel (0) target = $region37
  $region36: #{unet_block_forward.1} parent=0 // pred_region
    _
  $region37: #{unet_block_forward.1} parent=0 // pred_fallthru
    _
  // Predicated region
  $region38: #{unet_block_forward.1} parent=0 // pred_check
    _
  $region39: #{unet_block_forward.1} parent=0 // pred_check_branch
    %1445 = sbr.rel (0) target = $region41
  $region40: #{unet_block_forward.1} parent=0 // pred_region
    _
  $region41: #{unet_block_forward.1} parent=0 // pred_fallthru
    _

</llo_original>
